<compile_context>
chip_gen: v7x
topology: tpu7x:2x2x1
jax: 0.10.0
libtpu: 0.0.40
codegen_flags: <defaults>
</compile_context>

<pallas_src>
import functools

import numpy as np

import jax
import jax.numpy as jnp
from jax import lax
from jax.experimental import pallas as pl
from jax.experimental.pallas import tpu as pltpu


# ----------------------------------------------------------------------------
# Constant adaptive-avg-pool weight matrix (built at trace time, static shapes).
# ----------------------------------------------------------------------------
def _adaptive_pool_matrix(d, h, w, s):
    """(D*H*W, s^3) weights such that pooled = x_flat @ P matches AdaptiveAvgPool3d.

    Bin edges match torch: [floor(i*S/s), ceil((i+1)*S/s)) per axis.
    Column order matches .view(N, C, s^3): col = i*s^2 + j*s + k.
    Row order matches reshape(..., D*H*W):  row = z*H*W + y*W + x.
    """
    def bins(size, out):
        return [((i * size) // out, -(-((i + 1) * size) // out)) for i in range(out)]

    p = np.zeros((d * h * w, s * s * s), dtype=np.float32)
    for i, (d0, d1) in enumerate(bins(d, s)):
        for j, (h0, h1) in enumerate(bins(h, s)):
            for k, (w0, w1) in enumerate(bins(w, s)):
                col = (i * s + j) * s + k
                wgt = 1.0 / ((d1 - d0) * (h1 - h0) * (w1 - w0))
                for z in range(d0, d1):
                    for y in range(h0, h1):
                        for x in range(w0, w1):
                            p[(z * h + y) * w + x, col] = wgt
    return jnp.asarray(p)


# ----------------------------------------------------------------------------
# Fused Pallas kernel: pooling + normalization + fused Gram-difference + MSE.
# ----------------------------------------------------------------------------
def _region_loss_kernel(x1_ref, x2_ref, pa_ref, pb_ref, out_ref, *, n_batch):
    eps2 = jnp.float32(1e-16)  # (torch cosine_similarity eps=1e-8)^2 clamp on sum-of-squares

    x1 = x1_ref[...].astype(jnp.float32)  # (N, C, V)
    x2 = x2_ref[...].astype(jnp.float32)

    def normalized_pool(xi, p_ref):
        """Pool one (C, V) batch slice and L2-normalize every spatial bin over channels."""
        s3 = p_ref.shape[1]
        if s3 == 1:
            pooled = jnp.mean(xi, axis=-1, keepdims=True)                         # (C, 1)
        else:
            pooled = jnp.dot(xi, p_ref[...], preferred_element_type=jnp.float32)  # (C, s3)
        # 1 / max(||col||, eps) == rsqrt(max(sum(col^2), eps^2))   (EUP slot)
        inv = lax.rsqrt(jnp.maximum(jnp.sum(pooled * pooled, axis=0, keepdims=True), eps2))
        return pooled * inv  # unit-norm columns (channels down the sublanes)

    def pool_pair_mse(p_ref):
        s3 = p_ref.shape[1]
        # Fused pair: block(i, j) of (sim_a - sim_b) == [a_i|b_i]^T @ [a_j|-b_j].
        lhs, rhs = [], []
        for i in range(n_batch):
            a = normalized_pool(x1[i], p_ref)               # (C, s3)
            b = normalized_pool(x2[i], p_ref)
            lhs.append(jnp.concatenate([a, b], axis=0))     # (2C, s3)
            rhs.append(jnp.concatenate([a, -b], axis=0))
        dn = (((0,), (0,)), ((), ()))  # contract channel dim of both (== pl.dot trans_a=True)
        total = jnp.float32(0.0)
        for i in range(n_batch):
            for j in range(n_batch):
                if s3 == 1:
                    d = jnp.sum(lhs[i] * rhs[j])            # 1x1 block: plain reduce
                    total = total + d * d
                else:
                    blk = lax.dot_general(lhs[i], rhs[j], dn,
                                          preferred_element_type=jnp.float32)  # (s3, s3)
                    total = total + jnp.sum(blk * blk)
        m = n_batch * s3
        return total * jnp.float32(1.0 / (m * m))

    mse1 = pool_pair_mse(pa_ref)
    mse2 = pool_pair_mse(pb_ref)
    # p5/p6 reuse pool2 => diff3 == diff2 exactly => (d1 + d2 + d3)/3 == (d1 + 2*d2)/3.
    out_ref[0, 0] = (mse1 + jnp.float32(2.0) * mse2) * jnp.float32(1.0 / 3.0)


# ----------------------------------------------------------------------------
# Module forward (wrapper does nothing but free reshapes + one pallas_call).
# ----------------------------------------------------------------------------
@functools.partial(jax.jit, static_argnames=("spatial_size",))
def region_loss_3d_multi_three(p1, p2, spatial_size=(1, 3, 5)):
    n, c, d, h, w = p1.shape
    v = d * h * w
    s1, s2 = int(spatial_size[0]), int(spatial_size[1])  # pool3 / spatial_size[2] unused in forward

    # Free, contiguous reshapes — no transpose / pad / pooling in the wrapper.
    x1 = p1.reshape(n, c, v)
    x2 = p2.reshape(n, c, v)
    pa = _adaptive_pool_matrix(d, h, w, s1)  # (V, s1^3); ignored in-kernel when s1 == 1
    pb = _adaptive_pool_matrix(d, h, w, s2)  # (V, s2^3)

    k1, k2 = s1 ** 3, s2 ** 3
    cost = pl.CostEstimate(
        flops=4 * n * c * v * (k1 + k2) + 8 * c * ((n * k1) ** 2 + (n * k2) ** 2),
        transcendentals=2 * n * (k1 + k2),
        bytes_accessed=4 * (2 * n * c * v + v * (k1 + k2) + 1),
    )

    out = pl.pallas_call(
        functools.partial(_region_loss_kernel, n_batch=n),
        out_shape=jax.ShapeDtypeStruct((1, 1), jnp.float32),
        in_specs=[pl.BlockSpec(memory_space=pltpu.MemorySpace.VMEM)] * 4,
        out_specs=pl.BlockSpec(memory_space=pltpu.MemorySpace.SMEM),
        cost_estimate=cost,
    )(x1, x2, pa, pb)
    return out[0, 0]


# ----------------------------------------------------------------------------
# Pure-JAX reference (mirrors the torch forward literally, incl. diff3).
# ----------------------------------------------------------------------------
def _ref_adaptive_avg_pool3d(x, s):
    def pool_axis(y, axis, out):
        size = y.shape[axis]
        pieces = []
        for i in range(out):
            lo, hi = (i * size) // out, -(-((i + 1) * size) // out)
            sl = [slice(None)] * y.ndim
            sl[axis] = slice(lo, hi)
            pieces.append(jnp.mean(y[tuple(sl)], axis=axis, keepdims=True))
        return jnp.concatenate(pieces, axis=axis)

    for ax in (2, 3, 4):
        x = pool_axis(x, ax, s)
    return x


def _ref_flatten(p_avg):
    n, c = p_avg.shape[0], p_avg.shape[1]
    flat = p_avg.reshape(n, c, -1)
    flat = jnp.transpose(flat, (0, 2, 1))
    return flat.reshape(-1, c)


def _ref_cos_sim_mse(a, b):
    eps = 1e-8
    an = a / jnp.maximum(jnp.linalg.norm(a, axis=-1, keepdims=True), eps)
    bn = b / jnp.maximum(jnp.linalg.norm(b, axis=-1, keepdims=True), eps)
    return jnp.mean((an @ an.T - bn @ bn.T) ** 2)


def _reference_loss(p1, p2, spatial_size=(1, 3, 5)):
    aa = _ref_flatten(_ref_adaptive_avg_pool3d(p1, spatial_size[0]))
    bb = _ref_flatten(_ref_adaptive_avg_pool3d(p2, spatial_size[0]))
    cc = _ref_flatten(_ref_adaptive_avg_pool3d(p1, spatial_size[1]))
    dd = _ref_flatten(_ref_adaptive_avg_pool3d(p2, spatial_size[1]))
    ee = _ref_flatten(_ref_adaptive_avg_pool3d(p1, spatial_size[1]))
    ff = _ref_flatten(_ref_adaptive_avg_pool3d(p2, spatial_size[1]))
    d1 = _ref_cos_sim_mse(aa, bb)
    d2 = _ref_cos_sim_mse(cc, dd)
    d3 = _ref_cos_sim_mse(ee, ff)
    return (d1 + d2 + d3) / 3.0


if __name__ == "__main__":
    key = jax.random.PRNGKey(0)
    key1, key2 = jax.random.split(key)

    # Small 3D feature maps: (N, C, D, H, W) = (2, 32, 6, 6, 6)
    p1 = jax.random.normal(key1, (2, 32, 6, 6, 6), dtype=jnp.float32)
    p2 = jax.random.normal(key2, (2, 32, 6, 6, 6), dtype=jnp.float32)

    loss = jax.block_until_ready(region_loss_3d_multi_three(p1, p2))
    ref = jax.block_until_ready(_reference_loss(p1, p2))
    assert jnp.allclose(loss, ref, rtol=1e-4, atol=1e-6), (loss, ref)

    print("KERNEL_OK")
</pallas_src>

<mosaic_0001>
module attributes {stable_mosaic.version = 11 : i64} {
  func.func @_region_loss_kernel(%arg0: memref<2x32x216xf32, #tpu.memory_space<vmem>>, %arg1: memref<2x32x216xf32, #tpu.memory_space<vmem>>, %arg2: memref<216x1xf32, #tpu.memory_space<vmem>>, %arg3: memref<216x27xf32, #tpu.memory_space<vmem>>, %arg4: memref<1x1xf32, #tpu.memory_space<smem>>) attributes {dimension_semantics = [], scalar_prefetch = 0 : i64, scratch_operands = 0 : i64, tpu.core_type = #tpu.core_type<tc>} {
    %c0 = arith.constant 0 : index
    %c0_0 = arith.constant 0 : index
    %c0_1 = arith.constant 0 : index
    %0 = vector.load %arg0[%c0, %c0_0, %c0_1] : memref<2x32x216xf32, #tpu.memory_space<vmem>>, vector<2x32x216xf32>
    %c0_2 = arith.constant 0 : index
    %c0_3 = arith.constant 0 : index
    %c0_4 = arith.constant 0 : index
    %1 = vector.load %arg1[%c0_2, %c0_3, %c0_4] : memref<2x32x216xf32, #tpu.memory_space<vmem>>, vector<2x32x216xf32>
    %2 = vector.extract_strided_slice %0 {offsets = [0, 0, 0], sizes = [1, 32, 216], strides = [1, 1, 1]} : vector<2x32x216xf32> to vector<1x32x216xf32>
    %3 = vector.shape_cast %2 : vector<1x32x216xf32> to vector<32x216xf32>
    %cst = arith.constant dense<0.000000e+00> : vector<32xf32>
    %4 = vector.multi_reduction <add>, %3, %cst [1] : vector<32x216xf32> to vector<32xf32>
    %5 = vector.shape_cast %4 : vector<32xf32> to vector<32x1xf32>
    %cst_5 = arith.constant 2.160000e+02 : f32
    %6 = vector.broadcast %cst_5 : f32 to vector<32x1xf32>
    %7 = arith.divf %5, %6 : vector<32x1xf32>
    %8 = arith.mulf %7, %7 : vector<32x1xf32>
    %cst_6 = arith.constant dense<0.000000e+00> : vector<1xf32>
    %9 = vector.multi_reduction <add>, %8, %cst_6 [0] : vector<32x1xf32> to vector<1xf32>
    %10 = vector.shape_cast %9 : vector<1xf32> to vector<1x1xf32>
    %cst_7 = arith.constant 1.000000e-16 : f32
    %11 = vector.broadcast %cst_7 : f32 to vector<1x1xf32>
    %12 = arith.maximumf %10, %11 : vector<1x1xf32>
    %13 = math.rsqrt %12 : vector<1x1xf32>
    %14 = vector.broadcast %13 : vector<1x1xf32> to vector<32x1xf32>
    %15 = arith.mulf %7, %14 : vector<32x1xf32>
    %16 = vector.extract_strided_slice %1 {offsets = [0, 0, 0], sizes = [1, 32, 216], strides = [1, 1, 1]} : vector<2x32x216xf32> to vector<1x32x216xf32>
    %17 = vector.shape_cast %16 : vector<1x32x216xf32> to vector<32x216xf32>
    %cst_8 = arith.constant dense<0.000000e+00> : vector<32xf32>
    %18 = vector.multi_reduction <add>, %17, %cst_8 [1] : vector<32x216xf32> to vector<32xf32>
    %19 = vector.shape_cast %18 : vector<32xf32> to vector<32x1xf32>
    %cst_9 = arith.constant 2.160000e+02 : f32
    %20 = vector.broadcast %cst_9 : f32 to vector<32x1xf32>
    %21 = arith.divf %19, %20 : vector<32x1xf32>
    %22 = arith.mulf %21, %21 : vector<32x1xf32>
    %cst_10 = arith.constant dense<0.000000e+00> : vector<1xf32>
    %23 = vector.multi_reduction <add>, %22, %cst_10 [0] : vector<32x1xf32> to vector<1xf32>
    %24 = vector.shape_cast %23 : vector<1xf32> to vector<1x1xf32>
    %cst_11 = arith.constant 1.000000e-16 : f32
    %25 = vector.broadcast %cst_11 : f32 to vector<1x1xf32>
    %26 = arith.maximumf %24, %25 : vector<1x1xf32>
    %27 = math.rsqrt %26 : vector<1x1xf32>
    %28 = vector.broadcast %27 : vector<1x1xf32> to vector<32x1xf32>
    %29 = arith.mulf %21, %28 : vector<32x1xf32>
    %30 = tpu.concatenate %15, %29 in 0 : vector<32x1xf32>, vector<32x1xf32> -> vector<64x1xf32>
    %cst_12 = arith.constant 0.000000e+00 : f32
    %31 = vector.broadcast %cst_12 : f32 to vector<32x1xf32>
    %32 = arith.subf %31, %29 : vector<32x1xf32>
    %33 = tpu.concatenate %15, %32 in 0 : vector<32x1xf32>, vector<32x1xf32> -> vector<64x1xf32>
    %34 = vector.extract_strided_slice %0 {offsets = [1, 0, 0], sizes = [1, 32, 216], strides = [1, 1, 1]} : vector<2x32x216xf32> to vector<1x32x216xf32>
    %35 = vector.shape_cast %34 : vector<1x32x216xf32> to vector<32x216xf32>
    %cst_13 = arith.constant dense<0.000000e+00> : vector<32xf32>
    %36 = vector.multi_reduction <add>, %35, %cst_13 [1] : vector<32x216xf32> to vector<32xf32>
    %37 = vector.shape_cast %36 : vector<32xf32> to vector<32x1xf32>
    %cst_14 = arith.constant 2.160000e+02 : f32
    %38 = vector.broadcast %cst_14 : f32 to vector<32x1xf32>
    %39 = arith.divf %37, %38 : vector<32x1xf32>
    %40 = arith.mulf %39, %39 : vector<32x1xf32>
    %cst_15 = arith.constant dense<0.000000e+00> : vector<1xf32>
    %41 = vector.multi_reduction <add>, %40, %cst_15 [0] : vector<32x1xf32> to vector<1xf32>
    %42 = vector.shape_cast %41 : vector<1xf32> to vector<1x1xf32>
    %cst_16 = arith.constant 1.000000e-16 : f32
    %43 = vector.broadcast %cst_16 : f32 to vector<1x1xf32>
    %44 = arith.maximumf %42, %43 : vector<1x1xf32>
    %45 = math.rsqrt %44 : vector<1x1xf32>
    %46 = vector.broadcast %45 : vector<1x1xf32> to vector<32x1xf32>
    %47 = arith.mulf %39, %46 : vector<32x1xf32>
    %48 = vector.extract_strided_slice %1 {offsets = [1, 0, 0], sizes = [1, 32, 216], strides = [1, 1, 1]} : vector<2x32x216xf32> to vector<1x32x216xf32>
    %49 = vector.shape_cast %48 : vector<1x32x216xf32> to vector<32x216xf32>
    %cst_17 = arith.constant dense<0.000000e+00> : vector<32xf32>
    %50 = vector.multi_reduction <add>, %49, %cst_17 [1] : vector<32x216xf32> to vector<32xf32>
    %51 = vector.shape_cast %50 : vector<32xf32> to vector<32x1xf32>
    %cst_18 = arith.constant 2.160000e+02 : f32
    %52 = vector.broadcast %cst_18 : f32 to vector<32x1xf32>
    %53 = arith.divf %51, %52 : vector<32x1xf32>
    %54 = arith.mulf %53, %53 : vector<32x1xf32>
    %cst_19 = arith.constant dense<0.000000e+00> : vector<1xf32>
    %55 = vector.multi_reduction <add>, %54, %cst_19 [0] : vector<32x1xf32> to vector<1xf32>
    %56 = vector.shape_cast %55 : vector<1xf32> to vector<1x1xf32>
    %cst_20 = arith.constant 1.000000e-16 : f32
    %57 = vector.broadcast %cst_20 : f32 to vector<1x1xf32>
    %58 = arith.maximumf %56, %57 : vector<1x1xf32>
    %59 = math.rsqrt %58 : vector<1x1xf32>
    %60 = vector.broadcast %59 : vector<1x1xf32> to vector<32x1xf32>
    %61 = arith.mulf %53, %60 : vector<32x1xf32>
    %62 = tpu.concatenate %47, %61 in 0 : vector<32x1xf32>, vector<32x1xf32> -> vector<64x1xf32>
    %cst_21 = arith.constant 0.000000e+00 : f32
    %63 = vector.broadcast %cst_21 : f32 to vector<32x1xf32>
    %64 = arith.subf %63, %61 : vector<32x1xf32>
    %65 = tpu.concatenate %47, %64 in 0 : vector<32x1xf32>, vector<32x1xf32> -> vector<64x1xf32>
    %66 = arith.mulf %30, %33 : vector<64x1xf32>
    %67 = vector.shape_cast %66 : vector<64x1xf32> to vector<1x64x1xf32>
    %cst_22 = arith.constant dense<0.000000e+00> : vector<1xf32>
    %68 = vector.multi_reduction <add>, %67, %cst_22 [1, 2] : vector<1x64x1xf32> to vector<1xf32>
    %69 = vector.shape_cast %68 : vector<1xf32> to vector<1x1x1xf32>
    %70 = vector.extract %69[0, 0, 0] : f32 from vector<1x1x1xf32>
    %71 = arith.mulf %70, %70 : f32
    %cst_23 = arith.constant 0.000000e+00 : f32
    %72 = arith.addf %cst_23, %71 : f32
    %73 = arith.mulf %30, %65 : vector<64x1xf32>
    %74 = vector.shape_cast %73 : vector<64x1xf32> to vector<1x64x1xf32>
    %cst_24 = arith.constant dense<0.000000e+00> : vector<1xf32>
    %75 = vector.multi_reduction <add>, %74, %cst_24 [1, 2] : vector<1x64x1xf32> to vector<1xf32>
    %76 = vector.shape_cast %75 : vector<1xf32> to vector<1x1x1xf32>
    %77 = vector.extract %76[0, 0, 0] : f32 from vector<1x1x1xf32>
    %78 = arith.mulf %77, %77 : f32
    %79 = arith.addf %72, %78 : f32
    %80 = arith.mulf %62, %33 : vector<64x1xf32>
    %81 = vector.shape_cast %80 : vector<64x1xf32> to vector<1x64x1xf32>
    %cst_25 = arith.constant dense<0.000000e+00> : vector<1xf32>
    %82 = vector.multi_reduction <add>, %81, %cst_25 [1, 2] : vector<1x64x1xf32> to vector<1xf32>
    %83 = vector.shape_cast %82 : vector<1xf32> to vector<1x1x1xf32>
    %84 = vector.extract %83[0, 0, 0] : f32 from vector<1x1x1xf32>
    %85 = arith.mulf %84, %84 : f32
    %86 = arith.addf %79, %85 : f32
    %87 = arith.mulf %62, %65 : vector<64x1xf32>
    %88 = vector.shape_cast %87 : vector<64x1xf32> to vector<1x64x1xf32>
    %cst_26 = arith.constant dense<0.000000e+00> : vector<1xf32>
    %89 = vector.multi_reduction <add>, %88, %cst_26 [1, 2] : vector<1x64x1xf32> to vector<1xf32>
    %90 = vector.shape_cast %89 : vector<1xf32> to vector<1x1x1xf32>
    %91 = vector.extract %90[0, 0, 0] : f32 from vector<1x1x1xf32>
    %92 = arith.mulf %91, %91 : f32
    %93 = arith.addf %86, %92 : f32
    %cst_27 = arith.constant 2.500000e-01 : f32
    %94 = arith.mulf %93, %cst_27 : f32
    %95 = vector.extract_strided_slice %0 {offsets = [0, 0, 0], sizes = [1, 32, 216], strides = [1, 1, 1]} : vector<2x32x216xf32> to vector<1x32x216xf32>
    %96 = vector.shape_cast %95 : vector<1x32x216xf32> to vector<32x216xf32>
    %c0_28 = arith.constant 0 : index
    %c0_29 = arith.constant 0 : index
    %97 = vector.load %arg3[%c0_28, %c0_29] : memref<216x27xf32, #tpu.memory_space<vmem>>, vector<216x27xf32>
    %cst_30 = arith.constant dense<0.000000e+00> : vector<32x27xf32>
    %98 = tpu.matmul %96, %97, %cst_30 {dimension_numbers = #tpu.dot_dimension_numbers<[1], [0], [0], [1], [0, 0, 1, 1], [], []>} : vector<32x216xf32>, vector<216x27xf32>, vector<32x27xf32> -> vector<32x27xf32>
    %99 = arith.mulf %98, %98 : vector<32x27xf32>
    %cst_31 = arith.constant dense<0.000000e+00> : vector<27xf32>
    %100 = vector.multi_reduction <add>, %99, %cst_31 [0] : vector<32x27xf32> to vector<27xf32>
    %101 = vector.shape_cast %100 : vector<27xf32> to vector<1x27xf32>
    %cst_32 = arith.constant 1.000000e-16 : f32
    %102 = vector.broadcast %cst_32 : f32 to vector<1x27xf32>
    %103 = arith.maximumf %101, %102 : vector<1x27xf32>
    %104 = math.rsqrt %103 : vector<1x27xf32>
    %105 = vector.broadcast %104 : vector<1x27xf32> to vector<32x27xf32>
    %106 = arith.mulf %98, %105 : vector<32x27xf32>
    %107 = vector.extract_strided_slice %1 {offsets = [0, 0, 0], sizes = [1, 32, 216], strides = [1, 1, 1]} : vector<2x32x216xf32> to vector<1x32x216xf32>
    %108 = vector.shape_cast %107 : vector<1x32x216xf32> to vector<32x216xf32>
    %c0_33 = arith.constant 0 : index
    %c0_34 = arith.constant 0 : index
    %109 = vector.load %arg3[%c0_33, %c0_34] : memref<216x27xf32, #tpu.memory_space<vmem>>, vector<216x27xf32>
    %cst_35 = arith.constant dense<0.000000e+00> : vector<32x27xf32>
    %110 = tpu.matmul %108, %109, %cst_35 {dimension_numbers = #tpu.dot_dimension_numbers<[1], [0], [0], [1], [0, 0, 1, 1], [], []>} : vector<32x216xf32>, vector<216x27xf32>, vector<32x27xf32> -> vector<32x27xf32>
    %111 = arith.mulf %110, %110 : vector<32x27xf32>
    %cst_36 = arith.constant dense<0.000000e+00> : vector<27xf32>
    %112 = vector.multi_reduction <add>, %111, %cst_36 [0] : vector<32x27xf32> to vector<27xf32>
    %113 = vector.shape_cast %112 : vector<27xf32> to vector<1x27xf32>
    %cst_37 = arith.constant 1.000000e-16 : f32
    %114 = vector.broadcast %cst_37 : f32 to vector<1x27xf32>
    %115 = arith.maximumf %113, %114 : vector<1x27xf32>
    %116 = math.rsqrt %115 : vector<1x27xf32>
    %117 = vector.broadcast %116 : vector<1x27xf32> to vector<32x27xf32>
    %118 = arith.mulf %110, %117 : vector<32x27xf32>
    %119 = tpu.concatenate %106, %118 in 0 : vector<32x27xf32>, vector<32x27xf32> -> vector<64x27xf32>
    %cst_38 = arith.constant 0.000000e+00 : f32
    %120 = vector.broadcast %cst_38 : f32 to vector<32x27xf32>
    %121 = arith.subf %120, %118 : vector<32x27xf32>
    %122 = tpu.concatenate %106, %121 in 0 : vector<32x27xf32>, vector<32x27xf32> -> vector<64x27xf32>
    %123 = vector.extract_strided_slice %0 {offsets = [1, 0, 0], sizes = [1, 32, 216], strides = [1, 1, 1]} : vector<2x32x216xf32> to vector<1x32x216xf32>
    %124 = vector.shape_cast %123 : vector<1x32x216xf32> to vector<32x216xf32>
    %c0_39 = arith.constant 0 : index
    %c0_40 = arith.constant 0 : index
    %125 = vector.load %arg3[%c0_39, %c0_40] : memref<216x27xf32, #tpu.memory_space<vmem>>, vector<216x27xf32>
    %cst_41 = arith.constant dense<0.000000e+00> : vector<32x27xf32>
    %126 = tpu.matmul %124, %125, %cst_41 {dimension_numbers = #tpu.dot_dimension_numbers<[1], [0], [0], [1], [0, 0, 1, 1], [], []>} : vector<32x216xf32>, vector<216x27xf32>, vector<32x27xf32> -> vector<32x27xf32>
    %127 = arith.mulf %126, %126 : vector<32x27xf32>
    %cst_42 = arith.constant dense<0.000000e+00> : vector<27xf32>
    %128 = vector.multi_reduction <add>, %127, %cst_42 [0] : vector<32x27xf32> to vector<27xf32>
    %129 = vector.shape_cast %128 : vector<27xf32> to vector<1x27xf32>
    %cst_43 = arith.constant 1.000000e-16 : f32
    %130 = vector.broadcast %cst_43 : f32 to vector<1x27xf32>
    %131 = arith.maximumf %129, %130 : vector<1x27xf32>
    %132 = math.rsqrt %131 : vector<1x27xf32>
    %133 = vector.broadcast %132 : vector<1x27xf32> to vector<32x27xf32>
    %134 = arith.mulf %126, %133 : vector<32x27xf32>
    %135 = vector.extract_strided_slice %1 {offsets = [1, 0, 0], sizes = [1, 32, 216], strides = [1, 1, 1]} : vector<2x32x216xf32> to vector<1x32x216xf32>
    %136 = vector.shape_cast %135 : vector<1x32x216xf32> to vector<32x216xf32>
    %c0_44 = arith.constant 0 : index
    %c0_45 = arith.constant 0 : index
    %137 = vector.load %arg3[%c0_44, %c0_45] : memref<216x27xf32, #tpu.memory_space<vmem>>, vector<216x27xf32>
    %cst_46 = arith.constant dense<0.000000e+00> : vector<32x27xf32>
    %138 = tpu.matmul %136, %137, %cst_46 {dimension_numbers = #tpu.dot_dimension_numbers<[1], [0], [0], [1], [0, 0, 1, 1], [], []>} : vector<32x216xf32>, vector<216x27xf32>, vector<32x27xf32> -> vector<32x27xf32>
    %139 = arith.mulf %138, %138 : vector<32x27xf32>
    %cst_47 = arith.constant dense<0.000000e+00> : vector<27xf32>
    %140 = vector.multi_reduction <add>, %139, %cst_47 [0] : vector<32x27xf32> to vector<27xf32>
    %141 = vector.shape_cast %140 : vector<27xf32> to vector<1x27xf32>
    %cst_48 = arith.constant 1.000000e-16 : f32
    %142 = vector.broadcast %cst_48 : f32 to vector<1x27xf32>
    %143 = arith.maximumf %141, %142 : vector<1x27xf32>
    %144 = math.rsqrt %143 : vector<1x27xf32>
    %145 = vector.broadcast %144 : vector<1x27xf32> to vector<32x27xf32>
    %146 = arith.mulf %138, %145 : vector<32x27xf32>
    %147 = tpu.concatenate %134, %146 in 0 : vector<32x27xf32>, vector<32x27xf32> -> vector<64x27xf32>
    %cst_49 = arith.constant 0.000000e+00 : f32
    %148 = vector.broadcast %cst_49 : f32 to vector<32x27xf32>
    %149 = arith.subf %148, %146 : vector<32x27xf32>
    %150 = tpu.concatenate %134, %149 in 0 : vector<32x27xf32>, vector<32x27xf32> -> vector<64x27xf32>
    %cst_50 = arith.constant dense<0.000000e+00> : vector<27x27xf32>
    %151 = tpu.matmul %119, %122, %cst_50 {dimension_numbers = #tpu.dot_dimension_numbers<[0], [0], [1], [1], [0, 1, 1, 1], [], []>} : vector<64x27xf32>, vector<64x27xf32>, vector<27x27xf32> -> vector<27x27xf32>
    %152 = arith.mulf %151, %151 : vector<27x27xf32>
    %153 = vector.shape_cast %152 : vector<27x27xf32> to vector<1x27x27xf32>
    %cst_51 = arith.constant dense<0.000000e+00> : vector<1xf32>
    %154 = vector.multi_reduction <add>, %153, %cst_51 [1, 2] : vector<1x27x27xf32> to vector<1xf32>
    %155 = vector.shape_cast %154 : vector<1xf32> to vector<1x1x1xf32>
    %156 = vector.extract %155[0, 0, 0] : f32 from vector<1x1x1xf32>
    %cst_52 = arith.constant 0.000000e+00 : f32
    %157 = arith.addf %cst_52, %156 : f32
    %cst_53 = arith.constant dense<0.000000e+00> : vector<27x27xf32>
    %158 = tpu.matmul %119, %150, %cst_53 {dimension_numbers = #tpu.dot_dimension_numbers<[0], [0], [1], [1], [0, 1, 1, 1], [], []>} : vector<64x27xf32>, vector<64x27xf32>, vector<27x27xf32> -> vector<27x27xf32>
    %159 = arith.mulf %158, %158 : vector<27x27xf32>
    %160 = vector.shape_cast %159 : vector<27x27xf32> to vector<1x27x27xf32>
    %cst_54 = arith.constant dense<0.000000e+00> : vector<1xf32>
    %161 = vector.multi_reduction <add>, %160, %cst_54 [1, 2] : vector<1x27x27xf32> to vector<1xf32>
    %162 = vector.shape_cast %161 : vector<1xf32> to vector<1x1x1xf32>
    %163 = vector.extract %162[0, 0, 0] : f32 from vector<1x1x1xf32>
    %164 = arith.addf %157, %163 : f32
    %cst_55 = arith.constant dense<0.000000e+00> : vector<27x27xf32>
    %165 = tpu.matmul %147, %122, %cst_55 {dimension_numbers = #tpu.dot_dimension_numbers<[0], [0], [1], [1], [0, 1, 1, 1], [], []>} : vector<64x27xf32>, vector<64x27xf32>, vector<27x27xf32> -> vector<27x27xf32>
    %166 = arith.mulf %165, %165 : vector<27x27xf32>
    %167 = vector.shape_cast %166 : vector<27x27xf32> to vector<1x27x27xf32>
    %cst_56 = arith.constant dense<0.000000e+00> : vector<1xf32>
    %168 = vector.multi_reduction <add>, %167, %cst_56 [1, 2] : vector<1x27x27xf32> to vector<1xf32>
    %169 = vector.shape_cast %168 : vector<1xf32> to vector<1x1x1xf32>
    %170 = vector.extract %169[0, 0, 0] : f32 from vector<1x1x1xf32>
    %171 = arith.addf %164, %170 : f32
    %cst_57 = arith.constant dense<0.000000e+00> : vector<27x27xf32>
    %172 = tpu.matmul %147, %150, %cst_57 {dimension_numbers = #tpu.dot_dimension_numbers<[0], [0], [1], [1], [0, 1, 1, 1], [], []>} : vector<64x27xf32>, vector<64x27xf32>, vector<27x27xf32> -> vector<27x27xf32>
    %173 = arith.mulf %172, %172 : vector<27x27xf32>
    %174 = vector.shape_cast %173 : vector<27x27xf32> to vector<1x27x27xf32>
    %cst_58 = arith.constant dense<0.000000e+00> : vector<1xf32>
    %175 = vector.multi_reduction <add>, %174, %cst_58 [1, 2] : vector<1x27x27xf32> to vector<1xf32>
    %176 = vector.shape_cast %175 : vector<1xf32> to vector<1x1x1xf32>
    %177 = vector.extract %176[0, 0, 0] : f32 from vector<1x1x1xf32>
    %178 = arith.addf %171, %177 : f32
    %cst_59 = arith.constant 3.42935527E-4 : f32
    %179 = arith.mulf %178, %cst_59 : f32
    %cst_60 = arith.constant 2.000000e+00 : f32
    %180 = arith.mulf %cst_60, %179 : f32
    %181 = arith.addf %94, %180 : f32
    %cst_61 = arith.constant 0.333333343 : f32
    %182 = arith.mulf %181, %cst_61 : f32
    %c0_62 = arith.constant 0 : index
    %c0_63 = arith.constant 0 : index
    %183 = memref.load %arg4[%c0_62, %c0_63] : memref<1x1xf32, #tpu.memory_space<smem>>
    memref.store %182, %arg4[%c0_62, %c0_63] : memref<1x1xf32, #tpu.memory_space<smem>>
    return
  }
}

</mosaic_0001>

<llo_original>
// kernel: region_loss_3d_multi_three.1
$region0: #{region_loss_3d_multi_three.1}
  #allocation0 [shape = 'u32[]', space=smem, size = 0x4, offset = 0x4, fixed_abs, tag = 'smem constant byte address 0x4 - core index']
  #allocation1 [shape = 'u32[144,128]{1,0:T(1,128)}', space=vmem, size = 0x12000, scoped, tag = 'internal scratch']
  %s0 = inlined_call_operand.vmem [shape: f32[2,32,216], index: 0, kind: input, shape index: {}]
  %s1 = inlined_call_operand.vmem [shape: f32[2,32,216], index: 1, kind: input, shape index: {}]
  %s2 = inlined_call_operand.vmem [shape: f32[216,1], index: 2, kind: input, shape index: {}]
  %s3 = inlined_call_operand.vmem [shape: f32[216,27], index: 3, kind: input, shape index: {}]
  %s4 = inlined_call_operand.hbm [shape: f32[1,1], index: 4, kind: output, shape index: {}]
  %s5 = sld [smem:[#allocation0]]
  $region26: #{region_loss_3d_multi_three.1} parent=0
    _
  %s7 = ssub.s32 1, %s5
  %s8 = scalar_select 0, %s7, %s5
  $region1: #{region_loss_3d_multi_three.1} parent=0
    #allocation2 [shape = 'u8[512]{0}', space=smem, size = 0x200, scoped, tag = 'output window, operand 0, single buffered']
    #allocation3 [shape = 's32[1]{0}', space=sflag, size = 0x4, scoped, tag = 'scoped memory for region_loss_3d_multi_three.1']
    %9 = vsyncpa [#allocation3], 0
    // Predicated region
    $region2: #{region_loss_3d_multi_three.1} parent=1 // pred_check
      _
    $region3: #{region_loss_3d_multi_three.1} parent=1 // pred_check_branch
      %11 = sbr.rel (0) target = $region5
    $region4: #{region_loss_3d_multi_three.1} parent=1 // pred_region
      _
    $region5: #{region_loss_3d_multi_three.1} parent=1 // pred_fallthru
      _
    // Predicated region
    $region6: #{region_loss_3d_multi_three.1} parent=1 // pred_check
      _
    $region7: #{region_loss_3d_multi_three.1} parent=1 // pred_check_branch
      %13 = sbr.rel (0) target = $region9
    $region8: #{region_loss_3d_multi_three.1} parent=1 // pred_region
      _
    $region9: #{region_loss_3d_multi_three.1} parent=1 // pred_fallthru
      _
    // Predicated region
    $region10: #{region_loss_3d_multi_three.1} parent=1 // pred_check
      _
    $region11: #{region_loss_3d_multi_three.1} parent=1 // pred_check_branch
      %15 = sbr.rel (0) target = $region13
    $region12: #{region_loss_3d_multi_three.1} parent=1 // pred_region
      _
    $region13: #{region_loss_3d_multi_three.1} parent=1 // pred_fallthru
      _
    // Predicated region
    $region14: #{region_loss_3d_multi_three.1} parent=1 // pred_check
      _
    $region15: #{region_loss_3d_multi_three.1} parent=1 // pred_check_branch
      %17 = sbr.rel (0) target = $region17
    $region16: #{region_loss_3d_multi_three.1} parent=1 // pred_region
      _
    $region17: #{region_loss_3d_multi_three.1} parent=1 // pred_fallthru
      _
    %v18 = vld [vmem:[%s0] sm:$0xff]
    %v19 = vld [vmem:[%s0 + $0x8] sm:$0xff]
    %v20 = vld [vmem:[%s0 + $0x10] sm:$0xff]
    %v21 = vld [vmem:[%s0 + $0x18] sm:$0xff]
    %v22 = vld [vmem:[%s0 + $0x20] sm:$0xff]
    %v23 = vld [vmem:[%s0 + $0x28] sm:$0xff]
    %v24 = vld [vmem:[%s0 + $0x30] sm:$0xff]
    %v25 = vld [vmem:[%s0 + $0x38] sm:$0xff]
    %v26 = vld [vmem:[%s0 + $0x40] sm:$0xff]
    %v27 = vld [vmem:[%s0 + $0x48] sm:$0xff]
    %v28 = vld [vmem:[%s0 + $0x50] sm:$0xff]
    %v29 = vld [vmem:[%s0 + $0x58] sm:$0xff]
    %v30 = vld [vmem:[%s0 + $0x60] sm:$0xff]
    %v31 = vld [vmem:[%s0 + $0x68] sm:$0xff]
    %v32 = vld [vmem:[%s0 + $0x70] sm:$0xff]
    %v33 = vld [vmem:[%s0 + $0x78] sm:$0xff]
    %v34 = vld [vmem:[%s1] sm:$0xff]
    %v35 = vld [vmem:[%s1 + $0x8] sm:$0xff]
    %v36 = vld [vmem:[%s1 + $0x10] sm:$0xff]
    %v37 = vld [vmem:[%s1 + $0x18] sm:$0xff]
    %v38 = vld [vmem:[%s1 + $0x20] sm:$0xff]
    %v39 = vld [vmem:[%s1 + $0x28] sm:$0xff]
    %v40 = vld [vmem:[%s1 + $0x30] sm:$0xff]
    %v41 = vld [vmem:[%s1 + $0x38] sm:$0xff]
    %v42 = vld [vmem:[%s1 + $0x40] sm:$0xff]
    %v43 = vld [vmem:[%s1 + $0x48] sm:$0xff]
    %v44 = vld [vmem:[%s1 + $0x50] sm:$0xff]
    %v45 = vld [vmem:[%s1 + $0x58] sm:$0xff]
    %v46 = vld [vmem:[%s1 + $0x60] sm:$0xff]
    %v47 = vld [vmem:[%s1 + $0x68] sm:$0xff]
    %v48 = vld [vmem:[%s1 + $0x70] sm:$0xff]
    %v49 = vld [vmem:[%s1 + $0x78] sm:$0xff]
    %vm50 = vcmask 719872
    %v51 = vsel %vm50, %v19, 0.0
    %v52 = vadd.f32 %v18, %v51
    %53 = vadd.xlane.f32.xlu0 %v52
    %v54 = vpop.xlane.xlu0 %53
    %v55 = vsel %vm50, %v21, 0.0
    %v56 = vadd.f32 %v20, %v55
    %57 = vadd.xlane.f32.xlu0 %v56
    %v58 = vpop.xlane.xlu0 %57
    %v59 = vsel %vm50, %v23, 0.0
    %v60 = vadd.f32 %v22, %v59
    %61 = vadd.xlane.f32.xlu0 %v60
    %v62 = vpop.xlane.xlu0 %61
    %v63 = vsel %vm50, %v25, 0.0
    %v64 = vadd.f32 %v24, %v63
    %65 = vadd.xlane.f32.xlu0 %v64
    %v66 = vpop.xlane.xlu0 %65
    %v67 = vrcp.pop 216.0
    %v68 = vmul.f32 %v54, %v67
    %v69 = vmul.f32 %v58, %v67
    %v70 = vmul.f32 %v62, %v67
    %v71 = vmul.f32 %v66, %v67
    %v72 = vmul.f32 %v68, %v68
    %v73 = vmul.f32 %v69, %v69
    %v74 = vmul.f32 %v70, %v70
    %v75 = vmul.f32 %v71, %v71
    %v76 = vadd.f32 %v72, %v73
    %v77 = vadd.f32 %v76, %v74
    %v78 = vadd.f32 %v77, %v75
    %v79 = vrot.slane %v78, 4
    %v80 = vadd.f32 %v78, %v79
    %v81 = vrot.slane %v80, 2
    %v82 = vadd.f32 %v80, %v81
    %v83 = vrot.slane %v82, 1
    %v84 = vadd.f32 %v82, %v83
    %v85 = vmax.f32 %v84, 1e-16
    %v86 = vrsqrt.pop %v85
    %v87 = vmul.f32 %v68, %v86
    %v88 = vmul.f32 %v69, %v86
    %v89 = vmul.f32 %v70, %v86
    %v90 = vmul.f32 %v71, %v86
    %v91 = vsel %vm50, %v35, 0.0
    %v92 = vadd.f32 %v34, %v91
    %93 = vadd.xlane.f32.xlu0 %v92
    %v94 = vpop.xlane.xlu0 %93
    %v95 = vsel %vm50, %v37, 0.0
    %v96 = vadd.f32 %v36, %v95
    %97 = vadd.xlane.f32.xlu0 %v96
    %v98 = vpop.xlane.xlu0 %97
    %v99 = vsel %vm50, %v39, 0.0
    %v100 = vadd.f32 %v38, %v99
    %101 = vadd.xlane.f32.xlu0 %v100
    %v102 = vpop.xlane.xlu0 %101
    %v103 = vsel %vm50, %v41, 0.0
    %v104 = vadd.f32 %v40, %v103
    %105 = vadd.xlane.f32.xlu0 %v104
    %v106 = vpop.xlane.xlu0 %105
    %v107 = vmul.f32 %v94, %v67
    %v108 = vmul.f32 %v98, %v67
    %v109 = vmul.f32 %v102, %v67
    %v110 = vmul.f32 %v106, %v67
    %v111 = vmul.f32 %v107, %v107
    %v112 = vmul.f32 %v108, %v108
    %v113 = vmul.f32 %v109, %v109
    %v114 = vmul.f32 %v110, %v110
    %v115 = vadd.f32 %v111, %v112
    %v116 = vadd.f32 %v115, %v113
    %v117 = vadd.f32 %v116, %v114
    %v118 = vrot.slane %v117, 4
    %v119 = vadd.f32 %v117, %v118
    %v120 = vrot.slane %v119, 2
    %v121 = vadd.f32 %v119, %v120
    %v122 = vrot.slane %v121, 1
    %v123 = vadd.f32 %v121, %v122
    %v124 = vmax.f32 %v123, 1e-16
    %v125 = vrsqrt.pop %v124
    %v126 = vmul.f32 %v107, %v125
    %v127 = vmul.f32 %v108, %v125
    %v128 = vmul.f32 %v109, %v125
    %v129 = vmul.f32 %v110, %v125
    %v130 = vsub.f32 0.0, %v126
    %v131 = vsub.f32 0.0, %v127
    %v132 = vsub.f32 0.0, %v128
    %v133 = vsub.f32 0.0, %v129
    %v134 = vsel %vm50, %v27, 0.0
    %v135 = vadd.f32 %v26, %v134
    %136 = vadd.xlane.f32.xlu0 %v135
    %v137 = vpop.xlane.xlu0 %136
    %v138 = vsel %vm50, %v29, 0.0
    %v139 = vadd.f32 %v28, %v138
    %140 = vadd.xlane.f32.xlu0 %v139
    %v141 = vpop.xlane.xlu0 %140
    %v142 = vsel %vm50, %v31, 0.0
    %v143 = vadd.f32 %v30, %v142
    %144 = vadd.xlane.f32.xlu0 %v143
    %v145 = vpop.xlane.xlu0 %144
    %v146 = vsel %vm50, %v33, 0.0
    %v147 = vadd.f32 %v32, %v146
    %148 = vadd.xlane.f32.xlu0 %v147
    %v149 = vpop.xlane.xlu0 %148
    %v150 = vmul.f32 %v137, %v67
    %v151 = vmul.f32 %v141, %v67
    %v152 = vmul.f32 %v145, %v67
    %v153 = vmul.f32 %v149, %v67
    %v154 = vmul.f32 %v150, %v150
    %v155 = vmul.f32 %v151, %v151
    %v156 = vmul.f32 %v152, %v152
    %v157 = vmul.f32 %v153, %v153
    %v158 = vadd.f32 %v154, %v155
    %v159 = vadd.f32 %v158, %v156
    %v160 = vadd.f32 %v159, %v157
    %v161 = vrot.slane %v160, 4
    %v162 = vadd.f32 %v160, %v161
    %v163 = vrot.slane %v162, 2
    %v164 = vadd.f32 %v162, %v163
    %v165 = vrot.slane %v164, 1
    %v166 = vadd.f32 %v164, %v165
    %v167 = vmax.f32 %v166, 1e-16
    %v168 = vrsqrt.pop %v167
    %v169 = vmul.f32 %v150, %v168
    %v170 = vmul.f32 %v151, %v168
    %v171 = vmul.f32 %v152, %v168
    %v172 = vmul.f32 %v153, %v168
    %v173 = vsel %vm50, %v43, 0.0
    %v174 = vadd.f32 %v42, %v173
    %175 = vadd.xlane.f32.xlu0 %v174
    %v176 = vpop.xlane.xlu0 %175
    %v177 = vsel %vm50, %v45, 0.0
    %v178 = vadd.f32 %v44, %v177
    %179 = vadd.xlane.f32.xlu0 %v178
    %v180 = vpop.xlane.xlu0 %179
    %v181 = vsel %vm50, %v47, 0.0
    %v182 = vadd.f32 %v46, %v181
    %183 = vadd.xlane.f32.xlu0 %v182
    %v184 = vpop.xlane.xlu0 %183
    %v185 = vsel %vm50, %v49, 0.0
    %v186 = vadd.f32 %v48, %v185
    %187 = vadd.xlane.f32.xlu0 %v186
    %v188 = vpop.xlane.xlu0 %187
    %v189 = vmul.f32 %v176, %v67
    %v190 = vmul.f32 %v180, %v67
    %v191 = vmul.f32 %v184, %v67
    %v192 = vmul.f32 %v188, %v67
    %v193 = vmul.f32 %v189, %v189
    %v194 = vmul.f32 %v190, %v190
    %v195 = vmul.f32 %v191, %v191
    %v196 = vmul.f32 %v192, %v192
    %v197 = vadd.f32 %v193, %v194
    %v198 = vadd.f32 %v197, %v195
    %v199 = vadd.f32 %v198, %v196
    %v200 = vrot.slane %v199, 4
    %v201 = vadd.f32 %v199, %v200
    %v202 = vrot.slane %v201, 2
    %v203 = vadd.f32 %v201, %v202
    %v204 = vrot.slane %v203, 1
    %v205 = vadd.f32 %v203, %v204
    %v206 = vmax.f32 %v205, 1e-16
    %v207 = vrsqrt.pop %v206
    %v208 = vmul.f32 %v189, %v207
    %v209 = vmul.f32 %v190, %v207
    %v210 = vmul.f32 %v191, %v207
    %v211 = vmul.f32 %v192, %v207
    %v212 = vsub.f32 0.0, %v208
    %v213 = vsub.f32 0.0, %v209
    %v214 = vsub.f32 0.0, %v210
    %v215 = vsub.f32 0.0, %v211
    %v216 = vmul.f32 %v87, %v87
    %v217 = vmul.f32 %v88, %v88
    %v218 = vmul.f32 %v89, %v89
    %v219 = vmul.f32 %v90, %v90
    %v220 = vmul.f32 %v126, %v130
    %v221 = vmul.f32 %v127, %v131
    %v222 = vmul.f32 %v128, %v132
    %v223 = vmul.f32 %v129, %v133
    %vm224 = vcmask 7168
    %v225 = vsel %vm224, %v216, 0.0
    %v226 = vsel %vm224, %v217, 0.0
    %v227 = vadd.f32 %v225, %v226
    %v228 = vsel %vm224, %v218, 0.0
    %v229 = vadd.f32 %v227, %v228
    %v230 = vsel %vm224, %v219, 0.0
    %v231 = vadd.f32 %v229, %v230
    %v232 = vsel %vm224, %v220, 0.0
    %v233 = vadd.f32 %v231, %v232
    %v234 = vsel %vm224, %v221, 0.0
    %v235 = vadd.f32 %v233, %v234
    %v236 = vsel %vm224, %v222, 0.0
    %v237 = vadd.f32 %v235, %v236
    %v238 = vsel %vm224, %v223, 0.0
    %v239 = vadd.f32 %v237, %v238
    %240 = vadd.xlane.f32.xlu0 %v239
    %v241 = vpop.xlane.xlu0 %240
    %v242 = vrot.slane %v241, 4
    %v243 = vadd.f32 %v241, %v242
    %v244 = vrot.slane %v243, 2
    %v245 = vadd.f32 %v243, %v244
    %v246 = vrot.slane %v245, 1
    %v247 = vadd.f32 %v245, %v246
    %s248 = vtos %v247
    %s249 = smul.f32 %s248, %s248
    %s250 = sadd.f32 %s249, 0.0
    %v251 = vmul.f32 %v87, %v169
    %v252 = vmul.f32 %v88, %v170
    %v253 = vmul.f32 %v89, %v171
    %v254 = vmul.f32 %v90, %v172
    %v255 = vmul.f32 %v126, %v212
    %v256 = vmul.f32 %v127, %v213
    %v257 = vmul.f32 %v128, %v214
    %v258 = vmul.f32 %v129, %v215
    %v259 = vsel %vm224, %v251, 0.0
    %v260 = vsel %vm224, %v252, 0.0
    %v261 = vadd.f32 %v259, %v260
    %v262 = vsel %vm224, %v253, 0.0
    %v263 = vadd.f32 %v261, %v262
    %v264 = vsel %vm224, %v254, 0.0
    %v265 = vadd.f32 %v263, %v264
    %v266 = vsel %vm224, %v255, 0.0
    %v267 = vadd.f32 %v265, %v266
    %v268 = vsel %vm224, %v256, 0.0
    %v269 = vadd.f32 %v267, %v268
    %v270 = vsel %vm224, %v257, 0.0
    %v271 = vadd.f32 %v269, %v270
    %v272 = vsel %vm224, %v258, 0.0
    %v273 = vadd.f32 %v271, %v272
    %274 = vadd.xlane.f32.xlu0 %v273
    %v275 = vpop.xlane.xlu0 %274
    %v276 = vrot.slane %v275, 4
    %v277 = vadd.f32 %v275, %v276
    %v278 = vrot.slane %v277, 2
    %v279 = vadd.f32 %v277, %v278
    %v280 = vrot.slane %v279, 1
    %v281 = vadd.f32 %v279, %v280
    %s282 = vtos %v281
    %s283 = smul.f32 %s282, %s282
    %s284 = sadd.f32 %s250, %s283
    %v285 = vmul.f32 %v208, %v130
    %v286 = vmul.f32 %v209, %v131
    %v287 = vmul.f32 %v210, %v132
    %v288 = vmul.f32 %v211, %v133
    %v289 = vsel %vm224, %v285, 0.0
    %v290 = vadd.f32 %v265, %v289
    %v291 = vsel %vm224, %v286, 0.0
    %v292 = vadd.f32 %v290, %v291
    %v293 = vsel %vm224, %v287, 0.0
    %v294 = vadd.f32 %v292, %v293
    %v295 = vsel %vm224, %v288, 0.0
    %v296 = vadd.f32 %v294, %v295
    %297 = vadd.xlane.f32.xlu0 %v296
    %v298 = vpop.xlane.xlu0 %297
    %v299 = vrot.slane %v298, 4
    %v300 = vadd.f32 %v298, %v299
    %v301 = vrot.slane %v300, 2
    %v302 = vadd.f32 %v300, %v301
    %v303 = vrot.slane %v302, 1
    %v304 = vadd.f32 %v302, %v303
    %s305 = vtos %v304
    %s306 = smul.f32 %s305, %s305
    %s307 = sadd.f32 %s284, %s306
    %v308 = vmul.f32 %v169, %v169
    %v309 = vmul.f32 %v170, %v170
    %v310 = vmul.f32 %v171, %v171
    %v311 = vmul.f32 %v172, %v172
    %v312 = vmul.f32 %v208, %v212
    %v313 = vmul.f32 %v209, %v213
    %v314 = vmul.f32 %v210, %v214
    %v315 = vmul.f32 %v211, %v215
    %v316 = vsel %vm224, %v308, 0.0
    %v317 = vsel %vm224, %v309, 0.0
    %v318 = vadd.f32 %v316, %v317
    %v319 = vsel %vm224, %v310, 0.0
    %v320 = vadd.f32 %v318, %v319
    %v321 = vsel %vm224, %v311, 0.0
    %v322 = vadd.f32 %v320, %v321
    %v323 = vsel %vm224, %v312, 0.0
    %v324 = vadd.f32 %v322, %v323
    %v325 = vsel %vm224, %v313, 0.0
    %v326 = vadd.f32 %v324, %v325
    %v327 = vsel %vm224, %v314, 0.0
    %v328 = vadd.f32 %v326, %v327
    %v329 = vsel %vm224, %v315, 0.0
    %v330 = vadd.f32 %v328, %v329
    %331 = vadd.xlane.f32.xlu0 %v330
    %v332 = vpop.xlane.xlu0 %331
    %v333 = vrot.slane %v332, 4
    %v334 = vadd.f32 %v332, %v333
    %v335 = vrot.slane %v334, 2
    %v336 = vadd.f32 %v334, %v335
    %v337 = vrot.slane %v336, 1
    %v338 = vadd.f32 %v336, %v337
    %s339 = vtos %v338
    %s340 = smul.f32 %s339, %s339
    %s341 = sadd.f32 %s307, %s340
    %s342 = smul.f32 %s341, 0.25
    %v343 = vld [vmem:[%s3] sm:$0xff]
    %v344 = vld [vmem:[%s3 + $0x8] sm:$0xff]
    %v345 = vld [vmem:[%s3 + $0x10] sm:$0xff]
    %v346 = vld [vmem:[%s3 + $0x18] sm:$0xff]
    %v347 = vld [vmem:[%s3 + $0x20] sm:$0xff]
    %v348 = vld [vmem:[%s3 + $0x28] sm:$0xff]
    %v349 = vld [vmem:[%s3 + $0x30] sm:$0xff]
    %v350 = vld [vmem:[%s3 + $0x38] sm:$0xff]
    %v351 = vld [vmem:[%s3 + $0x40] sm:$0xff]
    %v352 = vld [vmem:[%s3 + $0x48] sm:$0xff]
    %v353 = vld [vmem:[%s3 + $0x50] sm:$0xff]
    %v354 = vld [vmem:[%s3 + $0x58] sm:$0xff]
    %v355 = vld [vmem:[%s3 + $0x60] sm:$0xff]
    %v356 = vld [vmem:[%s3 + $0x68] sm:$0xff]
    %v357 = vld [vmem:[%s3 + $0x70] sm:$0xff]
    %v358 = vld [vmem:[%s3 + $0x78] sm:$0xff]
    %v359 = vld [vmem:[%s3 + $0x80] sm:$0xff]
    %v360 = vld [vmem:[%s3 + $0x88] sm:$0xff]
    %v361 = vld [vmem:[%s3 + $0x90] sm:$0xff]
    %v362 = vld [vmem:[%s3 + $0x98] sm:$0xff]
    %v363 = vld [vmem:[%s3 + $0xa0] sm:$0xff]
    %v364 = vld [vmem:[%s3 + $0xa8] sm:$0xff]
    %v365 = vld [vmem:[%s3 + $0xb0] sm:$0xff]
    %v366 = vld [vmem:[%s3 + $0xb8] sm:$0xff]
    %v367 = vld [vmem:[%s3 + $0xc0] sm:$0xff]
    %v368 = vld [vmem:[%s3 + $0xc8] sm:$0xff]
    %v369 = vld [vmem:[%s3 + $0xd0] sm:$0xff]
    %v371 = vsel %vm50, %v19, 0
    %v374 = vsel %vm50, %v21, 0
    %v377 = vsel %vm50, %v23, 0
    %v380 = vsel %vm50, %v25, 0
    %382 = vmatprep.subr.mxu0 0.0
    %383 = vmatpush1.msra.mxu0 %v343
    %384 = vmatprep.subr.mxu0 0.0
    %385 = vmatpush1.msra.mxu0 %v344
    %386 = vmatprep.subr.mxu0 0.0
    %387 = vmatpush1.msra.mxu0 %v345
    %388 = vmatprep.subr.mxu0 0.0
    %389 = vmatpush1.msra.mxu0 %v346
    %390 = vmatprep.subr.mxu0 0.0
    %391 = vmatpush1.msra.mxu0 %v347
    %392 = vmatprep.subr.mxu0 0.0
    %393 = vmatpush1.msra.mxu0 %v348
    %394 = vmatprep.subr.mxu0 0.0
    %395 = vmatpush1.msra.mxu0 %v349
    %396 = vmatprep.subr.mxu0 0.0
    %397 = vmatpush1.msra.mxu0 %v350
    %398 = vmatprep.subr.mxu0 0.0
    %399 = vmatpush1.msra.mxu0 %v351
    %400 = vmatprep.subr.mxu0 0.0
    %401 = vmatpush1.msra.mxu0 %v352
    %402 = vmatprep.subr.mxu0 0.0
    %403 = vmatpush1.msra.mxu0 %v353
    %404 = vmatprep.subr.mxu0 0.0
    %405 = vmatpush1.msra.mxu0 %v354
    %406 = vmatprep.subr.mxu0 0.0
    %407 = vmatpush1.msra.mxu0 %v355
    %408 = vmatprep.subr.mxu0 0.0
    %409 = vmatpush1.msra.mxu0 %v356
    %410 = vmatprep.subr.mxu0 0.0
    %411 = vmatpush1.msra.mxu0 %v357
    %412 = vmatprep.subr.mxu0 0.0
    %413 = vmatpush1.msra.mxu0 %v358
    %414 = vmatprep.subr.mxu0 0.0
    %415 = vmatpush1.msra.mxu0 %v359
    %416 = vmatprep.subr.mxu0 0.0
    %417 = vmatpush1.msra.mxu0 %v360
    %418 = vmatprep.subr.mxu0 0.0
    %419 = vmatpush1.msra.mxu0 %v361
    %420 = vmatprep.subr.mxu0 0.0
    %421 = vmatpush1.msra.mxu0 %v362
    %422 = vmatprep.subr.mxu0 0.0
    %423 = vmatpush1.msra.mxu0 %v363
    %424 = vmatprep.subr.mxu0 0.0
    %425 = vmatpush1.msra.mxu0 %v364
    %426 = vmatprep.subr.mxu0 0.0
    %427 = vmatpush1.msra.mxu0 %v365
    %428 = vmatprep.subr.mxu0 0.0
    %429 = vmatpush1.msra.mxu0 %v366
    %430 = vmatprep.subr.mxu0 0.0
    %431 = vmatpush1.msra.mxu0 %v367
    %432 = vmatprep.subr.mxu0 0.0
    %433 = vmatpush1.msra.mxu0 %v368
    %434 = vmatprep.subr.mxu0 0.0
    %435 = vmatpush1.msra.mxu0 %v369
    %436 = vmatprep.subr.mxu0 0.0
    %437 = vmatpush1.msra.mxu0 0.0
    %438 = vmatprep.subr.mxu0 0.0
    %439 = vmatpush1.msra.mxu0 0.0
    %440 = vmatprep.subr.mxu0 0.0
    %441 = vmatpush1.msra.mxu0 0.0
    %442 = vmatprep.subr.mxu0 0.0
    %443 = vmatpush1.msra.mxu0 0.0
    %444 = vmatprep.subr.mxu0 0.0
    %445 = vmatpush1.msra.mxu0 0.0
    %446 = vmatprep.mubr.f32.mxu0 %v371
    %447 = vmatmul.mubr.f32.gmra.mrb[0].mxu0 %v18
    %v448 = vpop.f32.mrb[0].mxu0
    %v449 = vadd.f32 0.0, %v448
    %v450 = vpop.f32.mrb[0].mxu0
    %451 = vmatprep.mubr.f32.mxu0 %v374
    %452 = vmatmul.mubr.f32.gmra.mrb[0].mxu0 %v20
    %v453 = vpop.f32.mrb[0].mxu0
    %v454 = vadd.f32 0.0, %v453
    %v455 = vpop.f32.mrb[0].mxu0
    %456 = vmatprep.mubr.f32.mxu0 %v377
    %457 = vmatmul.mubr.f32.gmra.mrb[0].mxu0 %v22
    %v458 = vpop.f32.mrb[0].mxu0
    %v459 = vadd.f32 0.0, %v458
    %v460 = vpop.f32.mrb[0].mxu0
    %461 = vmatprep.mubr.f32.mxu0 %v380
    %462 = vmatmul.mubr.f32.gmra.mrb[0].mxu0 %v24
    %v463 = vpop.f32.mrb[0].mxu0
    %v464 = vadd.f32 0.0, %v463
    %v465 = vpop.f32.mrb[0].mxu0
    %466 = vdwg.mxu0
    %v467 = vmul.f32 %v449, %v449
    %v468 = vmul.f32 %v454, %v454
    %v469 = vmul.f32 %v459, %v459
    %v470 = vmul.f32 %v464, %v464
    %vm471 = vcmask 220160
    %v472 = vsel %vm471, %v467, 0.0
    %v473 = vsel %vm471, %v468, 0.0
    %v474 = vadd.f32 %v472, %v473
    %v475 = vsel %vm471, %v469, 0.0
    %v476 = vadd.f32 %v474, %v475
    %v477 = vsel %vm471, %v470, 0.0
    %v478 = vadd.f32 %v476, %v477
    %v479 = vrot.slane %v478, 4
    %v480 = vadd.f32 %v478, %v479
    %v481 = vrot.slane %v480, 2
    %v482 = vadd.f32 %v480, %v481
    %v483 = vrot.slane %v482, 1
    %v484 = vadd.f32 %v482, %v483
    %v485 = vmax.f32 %v484, 1e-16
    %v486 = vrsqrt.pop %v485
    %v487 = vmul.f32 %v449, %v486
    %v488 = vmul.f32 %v454, %v486
    %v489 = vmul.f32 %v459, %v486
    %v490 = vmul.f32 %v464, %v486
    %v492 = vsel %vm50, %v35, 0
    %v495 = vsel %vm50, %v37, 0
    %v498 = vsel %vm50, %v39, 0
    %v501 = vsel %vm50, %v41, 0
    %503 = vmatprep.subr.mxu0 0.0
    %504 = vmatpush1.msra.mxu0 %v343
    %505 = vmatprep.subr.mxu0 0.0
    %506 = vmatpush1.msra.mxu0 %v344
    %507 = vmatprep.subr.mxu0 0.0
    %508 = vmatpush1.msra.mxu0 %v345
    %509 = vmatprep.subr.mxu0 0.0
    %510 = vmatpush1.msra.mxu0 %v346
    %511 = vmatprep.subr.mxu0 0.0
    %512 = vmatpush1.msra.mxu0 %v347
    %513 = vmatprep.subr.mxu0 0.0
    %514 = vmatpush1.msra.mxu0 %v348
    %515 = vmatprep.subr.mxu0 0.0
    %516 = vmatpush1.msra.mxu0 %v349
    %517 = vmatprep.subr.mxu0 0.0
    %518 = vmatpush1.msra.mxu0 %v350
    %519 = vmatprep.subr.mxu0 0.0
    %520 = vmatpush1.msra.mxu0 %v351
    %521 = vmatprep.subr.mxu0 0.0
    %522 = vmatpush1.msra.mxu0 %v352
    %523 = vmatprep.subr.mxu0 0.0
    %524 = vmatpush1.msra.mxu0 %v353
    %525 = vmatprep.subr.mxu0 0.0
    %526 = vmatpush1.msra.mxu0 %v354
    %527 = vmatprep.subr.mxu0 0.0
    %528 = vmatpush1.msra.mxu0 %v355
    %529 = vmatprep.subr.mxu0 0.0
    %530 = vmatpush1.msra.mxu0 %v356
    %531 = vmatprep.subr.mxu0 0.0
    %532 = vmatpush1.msra.mxu0 %v357
    %533 = vmatprep.subr.mxu0 0.0
    %534 = vmatpush1.msra.mxu0 %v358
    %535 = vmatprep.subr.mxu0 0.0
    %536 = vmatpush1.msra.mxu0 %v359
    %537 = vmatprep.subr.mxu0 0.0
    %538 = vmatpush1.msra.mxu0 %v360
    %539 = vmatprep.subr.mxu0 0.0
    %540 = vmatpush1.msra.mxu0 %v361
    %541 = vmatprep.subr.mxu0 0.0
    %542 = vmatpush1.msra.mxu0 %v362
    %543 = vmatprep.subr.mxu0 0.0
    %544 = vmatpush1.msra.mxu0 %v363
    %545 = vmatprep.subr.mxu0 0.0
    %546 = vmatpush1.msra.mxu0 %v364
    %547 = vmatprep.subr.mxu0 0.0
    %548 = vmatpush1.msra.mxu0 %v365
    %549 = vmatprep.subr.mxu0 0.0
    %550 = vmatpush1.msra.mxu0 %v366
    %551 = vmatprep.subr.mxu0 0.0
    %552 = vmatpush1.msra.mxu0 %v367
    %553 = vmatprep.subr.mxu0 0.0
    %554 = vmatpush1.msra.mxu0 %v368
    %555 = vmatprep.subr.mxu0 0.0
    %556 = vmatpush1.msra.mxu0 %v369
    %557 = vmatprep.subr.mxu0 0.0
    %558 = vmatpush1.msra.mxu0 0.0
    %559 = vmatprep.subr.mxu0 0.0
    %560 = vmatpush1.msra.mxu0 0.0
    %561 = vmatprep.subr.mxu0 0.0
    %562 = vmatpush1.msra.mxu0 0.0
    %563 = vmatprep.subr.mxu0 0.0
    %564 = vmatpush1.msra.mxu0 0.0
    %565 = vmatprep.subr.mxu0 0.0
    %566 = vmatpush1.msra.mxu0 0.0
    %567 = vmatprep.mubr.f32.mxu0 %v492
    %568 = vmatmul.mubr.f32.gmra.mrb[0].mxu0 %v34
    %v569 = vpop.f32.mrb[0].mxu0
    %v570 = vadd.f32 0.0, %v569
    %v571 = vpop.f32.mrb[0].mxu0
    %572 = vmatprep.mubr.f32.mxu0 %v495
    %573 = vmatmul.mubr.f32.gmra.mrb[0].mxu0 %v36
    %v574 = vpop.f32.mrb[0].mxu0
    %v575 = vadd.f32 0.0, %v574
    %v576 = vpop.f32.mrb[0].mxu0
    %577 = vmatprep.mubr.f32.mxu0 %v498
    %578 = vmatmul.mubr.f32.gmra.mrb[0].mxu0 %v38
    %v579 = vpop.f32.mrb[0].mxu0
    %v580 = vadd.f32 0.0, %v579
    %v581 = vpop.f32.mrb[0].mxu0
    %582 = vmatprep.mubr.f32.mxu0 %v501
    %583 = vmatmul.mubr.f32.gmra.mrb[0].mxu0 %v40
    %v584 = vpop.f32.mrb[0].mxu0
    %v585 = vadd.f32 0.0, %v584
    %v586 = vpop.f32.mrb[0].mxu0
    %587 = vdwg.mxu0
    %v588 = vmul.f32 %v570, %v570
    %v589 = vmul.f32 %v575, %v575
    %v590 = vmul.f32 %v580, %v580
    %v591 = vmul.f32 %v585, %v585
    %v592 = vsel %vm471, %v588, 0.0
    %v593 = vsel %vm471, %v589, 0.0
    %v594 = vadd.f32 %v592, %v593
    %v595 = vsel %vm471, %v590, 0.0
    %v596 = vadd.f32 %v594, %v595
    %v597 = vsel %vm471, %v591, 0.0
    %v598 = vadd.f32 %v596, %v597
    %v599 = vrot.slane %v598, 4
    %v600 = vadd.f32 %v598, %v599
    %v601 = vrot.slane %v600, 2
    %v602 = vadd.f32 %v600, %v601
    %v603 = vrot.slane %v602, 1
    %v604 = vadd.f32 %v602, %v603
    %v605 = vmax.f32 %v604, 1e-16
    %v606 = vrsqrt.pop %v605
    %v607 = vmul.f32 %v570, %v606
    %v608 = vmul.f32 %v575, %v606
    %v609 = vmul.f32 %v580, %v606
    %v610 = vmul.f32 %v585, %v606
    %v611 = vsub.f32 0.0, %v607
    %v612 = vsub.f32 0.0, %v608
    %v613 = vsub.f32 0.0, %v609
    %v614 = vsub.f32 0.0, %v610
    %v616 = vsel %vm50, %v27, 0
    %v619 = vsel %vm50, %v29, 0
    %v622 = vsel %vm50, %v31, 0
    %v625 = vsel %vm50, %v33, 0
    %627 = vmatprep.subr.mxu0 0.0
    %628 = vmatpush1.msra.mxu0 %v343
    %629 = vmatprep.subr.mxu0 0.0
    %630 = vmatpush1.msra.mxu0 %v344
    %631 = vmatprep.subr.mxu0 0.0
    %632 = vmatpush1.msra.mxu0 %v345
    %633 = vmatprep.subr.mxu0 0.0
    %634 = vmatpush1.msra.mxu0 %v346
    %635 = vmatprep.subr.mxu0 0.0
    %636 = vmatpush1.msra.mxu0 %v347
    %637 = vmatprep.subr.mxu0 0.0
    %638 = vmatpush1.msra.mxu0 %v348
    %639 = vmatprep.subr.mxu0 0.0
    %640 = vmatpush1.msra.mxu0 %v349
    %641 = vmatprep.subr.mxu0 0.0
    %642 = vmatpush1.msra.mxu0 %v350
    %643 = vmatprep.subr.mxu0 0.0
    %644 = vmatpush1.msra.mxu0 %v351
    %645 = vmatprep.subr.mxu0 0.0
    %646 = vmatpush1.msra.mxu0 %v352
    %647 = vmatprep.subr.mxu0 0.0
    %648 = vmatpush1.msra.mxu0 %v353
    %649 = vmatprep.subr.mxu0 0.0
    %650 = vmatpush1.msra.mxu0 %v354
    %651 = vmatprep.subr.mxu0 0.0
    %652 = vmatpush1.msra.mxu0 %v355
    %653 = vmatprep.subr.mxu0 0.0
    %654 = vmatpush1.msra.mxu0 %v356
    %655 = vmatprep.subr.mxu0 0.0
    %656 = vmatpush1.msra.mxu0 %v357
    %657 = vmatprep.subr.mxu0 0.0
    %658 = vmatpush1.msra.mxu0 %v358
    %659 = vmatprep.subr.mxu0 0.0
    %660 = vmatpush1.msra.mxu0 %v359
    %661 = vmatprep.subr.mxu0 0.0
    %662 = vmatpush1.msra.mxu0 %v360
    %663 = vmatprep.subr.mxu0 0.0
    %664 = vmatpush1.msra.mxu0 %v361
    %665 = vmatprep.subr.mxu0 0.0
    %666 = vmatpush1.msra.mxu0 %v362
    %667 = vmatprep.subr.mxu0 0.0
    %668 = vmatpush1.msra.mxu0 %v363
    %669 = vmatprep.subr.mxu0 0.0
    %670 = vmatpush1.msra.mxu0 %v364
    %671 = vmatprep.subr.mxu0 0.0
    %672 = vmatpush1.msra.mxu0 %v365
    %673 = vmatprep.subr.mxu0 0.0
    %674 = vmatpush1.msra.mxu0 %v366
    %675 = vmatprep.subr.mxu0 0.0
    %676 = vmatpush1.msra.mxu0 %v367
    %677 = vmatprep.subr.mxu0 0.0
    %678 = vmatpush1.msra.mxu0 %v368
    %679 = vmatprep.subr.mxu0 0.0
    %680 = vmatpush1.msra.mxu0 %v369
    %681 = vmatprep.subr.mxu0 0.0
    %682 = vmatpush1.msra.mxu0 0.0
    %683 = vmatprep.subr.mxu0 0.0
    %684 = vmatpush1.msra.mxu0 0.0
    %685 = vmatprep.subr.mxu0 0.0
    %686 = vmatpush1.msra.mxu0 0.0
    %687 = vmatprep.subr.mxu0 0.0
    %688 = vmatpush1.msra.mxu0 0.0
    %689 = vmatprep.subr.mxu0 0.0
    %690 = vmatpush1.msra.mxu0 0.0
    %691 = vmatprep.mubr.f32.mxu0 %v616
    %692 = vmatmul.mubr.f32.gmra.mrb[0].mxu0 %v26
    %v693 = vpop.f32.mrb[0].mxu0
    %v694 = vadd.f32 0.0, %v693
    %v695 = vpop.f32.mrb[0].mxu0
    %696 = vmatprep.mubr.f32.mxu0 %v619
    %697 = vmatmul.mubr.f32.gmra.mrb[0].mxu0 %v28
    %v698 = vpop.f32.mrb[0].mxu0
    %v699 = vadd.f32 0.0, %v698
    %v700 = vpop.f32.mrb[0].mxu0
    %701 = vmatprep.mubr.f32.mxu0 %v622
    %702 = vmatmul.mubr.f32.gmra.mrb[0].mxu0 %v30
    %v703 = vpop.f32.mrb[0].mxu0
    %v704 = vadd.f32 0.0, %v703
    %v705 = vpop.f32.mrb[0].mxu0
    %706 = vmatprep.mubr.f32.mxu0 %v625
    %707 = vmatmul.mubr.f32.gmra.mrb[0].mxu0 %v32
    %v708 = vpop.f32.mrb[0].mxu0
    %v709 = vadd.f32 0.0, %v708
    %v710 = vpop.f32.mrb[0].mxu0
    %711 = vdwg.mxu0
    %v712 = vmul.f32 %v694, %v694
    %v713 = vmul.f32 %v699, %v699
    %v714 = vmul.f32 %v704, %v704
    %v715 = vmul.f32 %v709, %v709
    %v716 = vsel %vm471, %v712, 0.0
    %v717 = vsel %vm471, %v713, 0.0
    %v718 = vadd.f32 %v716, %v717
    %v719 = vsel %vm471, %v714, 0.0
    %v720 = vadd.f32 %v718, %v719
    %v721 = vsel %vm471, %v715, 0.0
    %v722 = vadd.f32 %v720, %v721
    %v723 = vrot.slane %v722, 4
    %v724 = vadd.f32 %v722, %v723
    %v725 = vrot.slane %v724, 2
    %v726 = vadd.f32 %v724, %v725
    %v727 = vrot.slane %v726, 1
    %v728 = vadd.f32 %v726, %v727
    %v729 = vmax.f32 %v728, 1e-16
    %v730 = vrsqrt.pop %v729
    %v731 = vmul.f32 %v694, %v730
    %v732 = vmul.f32 %v699, %v730
    %v733 = vmul.f32 %v704, %v730
    %v734 = vmul.f32 %v709, %v730
    %v736 = vsel %vm50, %v43, 0
    %v739 = vsel %vm50, %v45, 0
    %v742 = vsel %vm50, %v47, 0
    %v745 = vsel %vm50, %v49, 0
    %747 = vmatprep.subr.mxu0 0.0
    %748 = vmatpush1.msra.mxu0 %v343
    %749 = vmatprep.subr.mxu0 0.0
    %750 = vmatpush1.msra.mxu0 %v344
    %751 = vmatprep.subr.mxu0 0.0
    %752 = vmatpush1.msra.mxu0 %v345
    %753 = vmatprep.subr.mxu0 0.0
    %754 = vmatpush1.msra.mxu0 %v346
    %755 = vmatprep.subr.mxu0 0.0
    %756 = vmatpush1.msra.mxu0 %v347
    %757 = vmatprep.subr.mxu0 0.0
    %758 = vmatpush1.msra.mxu0 %v348
    %759 = vmatprep.subr.mxu0 0.0
    %760 = vmatpush1.msra.mxu0 %v349
    %761 = vmatprep.subr.mxu0 0.0
    %762 = vmatpush1.msra.mxu0 %v350
    %763 = vmatprep.subr.mxu0 0.0
    %764 = vmatpush1.msra.mxu0 %v351
    %765 = vmatprep.subr.mxu0 0.0
    %766 = vmatpush1.msra.mxu0 %v352
    %767 = vmatprep.subr.mxu0 0.0
    %768 = vmatpush1.msra.mxu0 %v353
    %769 = vmatprep.subr.mxu0 0.0
    %770 = vmatpush1.msra.mxu0 %v354
    %771 = vmatprep.subr.mxu0 0.0
    %772 = vmatpush1.msra.mxu0 %v355
    %773 = vmatprep.subr.mxu0 0.0
    %774 = vmatpush1.msra.mxu0 %v356
    %775 = vmatprep.subr.mxu0 0.0
    %776 = vmatpush1.msra.mxu0 %v357
    %777 = vmatprep.subr.mxu0 0.0
    %778 = vmatpush1.msra.mxu0 %v358
    %779 = vmatprep.subr.mxu0 0.0
    %780 = vmatpush1.msra.mxu0 %v359
    %781 = vmatprep.subr.mxu0 0.0
    %782 = vmatpush1.msra.mxu0 %v360
    %783 = vmatprep.subr.mxu0 0.0
    %784 = vmatpush1.msra.mxu0 %v361
    %785 = vmatprep.subr.mxu0 0.0
    %786 = vmatpush1.msra.mxu0 %v362
    %787 = vmatprep.subr.mxu0 0.0
    %788 = vmatpush1.msra.mxu0 %v363
    %789 = vmatprep.subr.mxu0 0.0
    %790 = vmatpush1.msra.mxu0 %v364
    %791 = vmatprep.subr.mxu0 0.0
    %792 = vmatpush1.msra.mxu0 %v365
    %793 = vmatprep.subr.mxu0 0.0
    %794 = vmatpush1.msra.mxu0 %v366
    %795 = vmatprep.subr.mxu0 0.0
    %796 = vmatpush1.msra.mxu0 %v367
    %797 = vmatprep.subr.mxu0 0.0
    %798 = vmatpush1.msra.mxu0 %v368
    %799 = vmatprep.subr.mxu0 0.0
    %800 = vmatpush1.msra.mxu0 %v369
    %801 = vmatprep.subr.mxu0 0.0
    %802 = vmatpush1.msra.mxu0 0.0
    %803 = vmatprep.subr.mxu0 0.0
    %804 = vmatpush1.msra.mxu0 0.0
    %805 = vmatprep.subr.mxu0 0.0
    %806 = vmatpush1.msra.mxu0 0.0
    %807 = vmatprep.subr.mxu0 0.0
    %808 = vmatpush1.msra.mxu0 0.0
    %809 = vmatprep.subr.mxu0 0.0
    %810 = vmatpush1.msra.mxu0 0.0
    %811 = vmatprep.mubr.f32.mxu0 %v736
    %812 = vmatmul.mubr.f32.gmra.mrb[0].mxu0 %v42
    %v813 = vpop.f32.mrb[0].mxu0
    %v814 = vadd.f32 0.0, %v813
    %v815 = vpop.f32.mrb[0].mxu0
    %816 = vmatprep.mubr.f32.mxu0 %v739
    %817 = vmatmul.mubr.f32.gmra.mrb[0].mxu0 %v44
    %v818 = vpop.f32.mrb[0].mxu0
    %v819 = vadd.f32 0.0, %v818
    %v820 = vpop.f32.mrb[0].mxu0
    %821 = vmatprep.mubr.f32.mxu0 %v742
    %822 = vmatmul.mubr.f32.gmra.mrb[0].mxu0 %v46
    %v823 = vpop.f32.mrb[0].mxu0
    %v824 = vadd.f32 0.0, %v823
    %v825 = vpop.f32.mrb[0].mxu0
    %826 = vmatprep.mubr.f32.mxu0 %v745
    %827 = vmatmul.mubr.f32.gmra.mrb[0].mxu0 %v48
    %v828 = vpop.f32.mrb[0].mxu0
    %v829 = vadd.f32 0.0, %v828
    %v830 = vpop.f32.mrb[0].mxu0
    %831 = vdwg.mxu0
    %v832 = vmul.f32 %v814, %v814
    %v833 = vmul.f32 %v819, %v819
    %v834 = vmul.f32 %v824, %v824
    %v835 = vmul.f32 %v829, %v829
    %v836 = vsel %vm471, %v832, 0.0
    %v837 = vsel %vm471, %v833, 0.0
    %v838 = vadd.f32 %v836, %v837
    %v839 = vsel %vm471, %v834, 0.0
    %v840 = vadd.f32 %v838, %v839
    %v841 = vsel %vm471, %v835, 0.0
    %v842 = vadd.f32 %v840, %v841
    %v843 = vrot.slane %v842, 4
    %v844 = vadd.f32 %v842, %v843
    %v845 = vrot.slane %v844, 2
    %v846 = vadd.f32 %v844, %v845
    %v847 = vrot.slane %v846, 1
    %v848 = vadd.f32 %v846, %v847
    %v849 = vmax.f32 %v848, 1e-16
    %v850 = vrsqrt.pop %v849
    %v851 = vmul.f32 %v814, %v850
    %v852 = vmul.f32 %v819, %v850
    %v853 = vmul.f32 %v824, %v850
    %v854 = vmul.f32 %v829, %v850
    %v855 = vsub.f32 0.0, %v851
    %v856 = vsub.f32 0.0, %v852
    %v857 = vsub.f32 0.0, %v853
    %v858 = vsub.f32 0.0, %v854
    %859 = vxpose.xlu0.b32.start [1/16] %v487, 128
    %860 = vxpose.xlu0.b32.cont [2/16] %v488, 128
    %861 = vxpose.xlu0.b32.cont [3/16] %v489, 128
    %862 = vxpose.xlu0.b32.cont [4/16] %v490, 128
    %863 = vxpose.xlu0.b32.cont [5/16] %v607, 128
    %864 = vxpose.xlu0.b32.cont [6/16] %v608, 128
    %865 = vxpose.xlu0.b32.cont [7/16] %v609, 128
    %866 = vxpose.xlu0.b32.cont [8/16] %v610, 128
    %867 = vxpose.xlu0.b32.cont [9/16] 0.0, 128
    %868 = vxpose.xlu0.b32.cont [10/16] 0.0, 128
    %869 = vxpose.xlu0.b32.cont [11/16] 0.0, 128
    %870 = vxpose.xlu0.b32.cont [12/16] 0.0, 128
    %871 = vxpose.xlu0.b32.cont [13/16] 0.0, 128
    %872 = vxpose.xlu0.b32.cont [14/16] 0.0, 128
    %873 = vxpose.xlu0.b32.cont [15/16] 0.0, 128
    %874 = vxpose.xlu0.b32.end [16/16] 0.0, 128
    %v875 = vpop.trf.xlu0
    %v876 = vpop.trf.xlu0
    %v877 = vpop.trf.xlu0
    %v878 = vpop.trf.xlu0
    %v879 = vpop.trf.xlu0
    %v880 = vpop.trf.xlu0
    %v881 = vpop.trf.xlu0
    %v882 = vpop.trf.xlu0
    %v883 = vpop.trf.xlu0
    %v884 = vpop.trf.xlu0
    %v885 = vpop.trf.xlu0
    %v886 = vpop.trf.xlu0
    %v887 = vpop.trf.xlu0
    %v888 = vpop.trf.xlu0
    %v889 = vpop.trf.xlu0
    %v890 = vpop.trf.xlu0
    %vm891 = vcmask 523264
    %v893 = vsel %vm891, %v875, 0
    %v896 = vsel %vm891, %v876, 0
    %v899 = vsel %vm891, %v877, 0
    %v902 = vsel %vm891, %v878, 0
    %904 = vmatprep.subr.mxu0 0.0
    %905 = vmatpush1.msra.mxu0 %v487
    %906 = vmatprep.subr.mxu0 0.0
    %907 = vmatpush1.msra.mxu0 %v488
    %908 = vmatprep.subr.mxu0 0.0
    %909 = vmatpush1.msra.mxu0 %v489
    %910 = vmatprep.subr.mxu0 0.0
    %911 = vmatpush1.msra.mxu0 %v490
    %912 = vmatprep.subr.mxu0 0.0
    %913 = vmatpush1.msra.mxu0 %v611
    %914 = vmatprep.subr.mxu0 0.0
    %915 = vmatpush1.msra.mxu0 %v612
    %916 = vmatprep.subr.mxu0 0.0
    %917 = vmatpush1.msra.mxu0 %v613
    %918 = vmatprep.subr.mxu0 0.0
    %919 = vmatpush1.msra.mxu0 %v614
    %920 = vmatprep.subr.mxu0 0.0
    %921 = vmatpush1.msra.mxu0 0.0
    %922 = vmatprep.subr.mxu0 0.0
    %923 = vmatpush1.msra.mxu0 0.0
    %924 = vmatprep.subr.mxu0 0.0
    %925 = vmatpush1.msra.mxu0 0.0
    %926 = vmatprep.subr.mxu0 0.0
    %927 = vmatpush1.msra.mxu0 0.0
    %928 = vmatprep.subr.mxu0 0.0
    %929 = vmatpush1.msra.mxu0 0.0
    %930 = vmatprep.subr.mxu0 0.0
    %931 = vmatpush1.msra.mxu0 0.0
    %932 = vmatprep.subr.mxu0 0.0
    %933 = vmatpush1.msra.mxu0 0.0
    %934 = vmatprep.subr.mxu0 0.0
    %935 = vmatpush1.msra.mxu0 0.0
    %936 = vmatprep.subr.mxu0 0.0
    %937 = vmatpush1.msra.mxu0 0.0
    %938 = vmatprep.subr.mxu0 0.0
    %939 = vmatpush1.msra.mxu0 0.0
    %940 = vmatprep.subr.mxu0 0.0
    %941 = vmatpush1.msra.mxu0 0.0
    %942 = vmatprep.subr.mxu0 0.0
    %943 = vmatpush1.msra.mxu0 0.0
    %944 = vmatprep.subr.mxu0 0.0
    %945 = vmatpush1.msra.mxu0 0.0
    %946 = vmatprep.subr.mxu0 0.0
    %947 = vmatpush1.msra.mxu0 0.0
    %948 = vmatprep.subr.mxu0 0.0
    %949 = vmatpush1.msra.mxu0 0.0
    %950 = vmatprep.subr.mxu0 0.0
    %951 = vmatpush1.msra.mxu0 0.0
    %952 = vmatprep.subr.mxu0 0.0
    %953 = vmatpush1.msra.mxu0 0.0
    %954 = vmatprep.subr.mxu0 0.0
    %955 = vmatpush1.msra.mxu0 0.0
    %956 = vmatprep.subr.mxu0 0.0
    %957 = vmatpush1.msra.mxu0 0.0
    %958 = vmatprep.subr.mxu0 0.0
    %959 = vmatpush1.msra.mxu0 0.0
    %960 = vmatprep.subr.mxu0 0.0
    %961 = vmatpush1.msra.mxu0 0.0
    %962 = vmatprep.subr.mxu0 0.0
    %963 = vmatpush1.msra.mxu0 0.0
    %964 = vmatprep.subr.mxu0 0.0
    %965 = vmatpush1.msra.mxu0 0.0
    %966 = vmatprep.subr.mxu0 0.0
    %967 = vmatpush1.msra.mxu0 0.0
    %968 = vmatprep.mubr.f32.mxu0 0.0
    %969 = vmatmul.mubr.f32.gmra.mrb[0].mxu0 %v893
    %v970 = vpop.f32.mrb[0].mxu0
    %v971 = vadd.f32 0.0, %v970
    %v972 = vpop.f32.mrb[0].mxu0
    %973 = vmatprep.mubr.f32.mxu0 0.0
    %974 = vmatmul.mubr.f32.gmra.mrb[0].mxu0 %v896
    %v975 = vpop.f32.mrb[0].mxu0
    %v976 = vadd.f32 0.0, %v975
    %v977 = vpop.f32.mrb[0].mxu0
    %978 = vmatprep.mubr.f32.mxu0 0.0
    %979 = vmatmul.mubr.f32.gmra.mrb[0].mxu0 %v899
    %v980 = vpop.f32.mrb[0].mxu0
    %v981 = vadd.f32 0.0, %v980
    %v982 = vpop.f32.mrb[0].mxu0
    %983 = vmatprep.mubr.f32.mxu0 0.0
    %984 = vmatmul.mubr.f32.gmra.mrb[0].mxu0 %v902
    %v985 = vpop.f32.mrb[0].mxu0
    %v986 = vadd.f32 0.0, %v985
    %v987 = vpop.f32.mrb[0].mxu0
    %988 = vdwg.mxu0
    %v989 = vmul.f32 %v971, %v971
    %v990 = vmul.f32 %v976, %v976
    %v991 = vmul.f32 %v981, %v981
    %v992 = vmul.f32 %v986, %v986
    %v993 = vsel %vm471, %v989, 0.0
    %v994 = vsel %vm471, %v990, 0.0
    %v995 = vadd.f32 %v993, %v994
    %v996 = vsel %vm471, %v991, 0.0
    %v997 = vadd.f32 %v995, %v996
    %vm998 = vcmask 215040
    %v999 = vsel %vm998, %v992, 0.0
    %v1000 = vadd.f32 %v997, %v999
    %1001 = vadd.xlane.f32.xlu0 %v1000
    %v1002 = vpop.xlane.xlu0 %1001
    %v1003 = vrot.slane %v1002, 4
    %v1004 = vadd.f32 %v1002, %v1003
    %v1005 = vrot.slane %v1004, 2
    %v1006 = vadd.f32 %v1004, %v1005
    %v1007 = vrot.slane %v1006, 1
    %v1008 = vadd.f32 %v1006, %v1007
    %s1009 = vtos %v1008
    %s1010 = sadd.f32 %s1009, 0.0
    %1011 = vmatprep.subr.mxu0 0.0
    %1012 = vmatpush1.msra.mxu0 %v731
    %1013 = vmatprep.subr.mxu0 0.0
    %1014 = vmatpush1.msra.mxu0 %v732
    %1015 = vmatprep.subr.mxu0 0.0
    %1016 = vmatpush1.msra.mxu0 %v733
    %1017 = vmatprep.subr.mxu0 0.0
    %1018 = vmatpush1.msra.mxu0 %v734
    %1019 = vmatprep.subr.mxu0 0.0
    %1020 = vmatpush1.msra.mxu0 %v855
    %1021 = vmatprep.subr.mxu0 0.0
    %1022 = vmatpush1.msra.mxu0 %v856
    %1023 = vmatprep.subr.mxu0 0.0
    %1024 = vmatpush1.msra.mxu0 %v857
    %1025 = vmatprep.subr.mxu0 0.0
    %1026 = vmatpush1.msra.mxu0 %v858
    %1027 = vmatprep.subr.mxu0 0.0
    %1028 = vmatpush1.msra.mxu0 0.0
    %1029 = vmatprep.subr.mxu0 0.0
    %1030 = vmatpush1.msra.mxu0 0.0
    %1031 = vmatprep.subr.mxu0 0.0
    %1032 = vmatpush1.msra.mxu0 0.0
    %1033 = vmatprep.subr.mxu0 0.0
    %1034 = vmatpush1.msra.mxu0 0.0
    %1035 = vmatprep.subr.mxu0 0.0
    %1036 = vmatpush1.msra.mxu0 0.0
    %1037 = vmatprep.subr.mxu0 0.0
    %1038 = vmatpush1.msra.mxu0 0.0
    %1039 = vmatprep.subr.mxu0 0.0
    %1040 = vmatpush1.msra.mxu0 0.0
    %1041 = vmatprep.subr.mxu0 0.0
    %1042 = vmatpush1.msra.mxu0 0.0
    %1043 = vmatprep.subr.mxu0 0.0
    %1044 = vmatpush1.msra.mxu0 0.0
    %1045 = vmatprep.subr.mxu0 0.0
    %1046 = vmatpush1.msra.mxu0 0.0
    %1047 = vmatprep.subr.mxu0 0.0
    %1048 = vmatpush1.msra.mxu0 0.0
    %1049 = vmatprep.subr.mxu0 0.0
    %1050 = vmatpush1.msra.mxu0 0.0
    %1051 = vmatprep.subr.mxu0 0.0
    %1052 = vmatpush1.msra.mxu0 0.0
    %1053 = vmatprep.subr.mxu0 0.0
    %1054 = vmatpush1.msra.mxu0 0.0
    %1055 = vmatprep.subr.mxu0 0.0
    %1056 = vmatpush1.msra.mxu0 0.0
    %1057 = vmatprep.subr.mxu0 0.0
    %1058 = vmatpush1.msra.mxu0 0.0
    %1059 = vmatprep.subr.mxu0 0.0
    %1060 = vmatpush1.msra.mxu0 0.0
    %1061 = vmatprep.subr.mxu0 0.0
    %1062 = vmatpush1.msra.mxu0 0.0
    %1063 = vmatprep.subr.mxu0 0.0
    %1064 = vmatpush1.msra.mxu0 0.0
    %1065 = vmatprep.subr.mxu0 0.0
    %1066 = vmatpush1.msra.mxu0 0.0
    %1067 = vmatprep.subr.mxu0 0.0
    %1068 = vmatpush1.msra.mxu0 0.0
    %1069 = vmatprep.subr.mxu0 0.0
    %1070 = vmatpush1.msra.mxu0 0.0
    %1071 = vmatprep.subr.mxu0 0.0
    %1072 = vmatpush1.msra.mxu0 0.0
    %1073 = vmatprep.subr.mxu0 0.0
    %1074 = vmatpush1.msra.mxu0 0.0
    %1075 = vmatprep.mubr.f32.mxu0 0.0
    %1076 = vmatmul.mubr.f32.gmra.mrb[0].mxu0 %v893
    %v1077 = vpop.f32.mrb[0].mxu0
    %v1078 = vadd.f32 0.0, %v1077
    %v1079 = vpop.f32.mrb[0].mxu0
    %1080 = vmatprep.mubr.f32.mxu0 0.0
    %1081 = vmatmul.mubr.f32.gmra.mrb[0].mxu0 %v896
    %v1082 = vpop.f32.mrb[0].mxu0
    %v1083 = vadd.f32 0.0, %v1082
    %v1084 = vpop.f32.mrb[0].mxu0
    %1085 = vmatprep.mubr.f32.mxu0 0.0
    %1086 = vmatmul.mubr.f32.gmra.mrb[0].mxu0 %v899
    %v1087 = vpop.f32.mrb[0].mxu0
    %v1088 = vadd.f32 0.0, %v1087
    %v1089 = vpop.f32.mrb[0].mxu0
    %1090 = vmatprep.mubr.f32.mxu0 0.0
    %1091 = vmatmul.mubr.f32.gmra.mrb[0].mxu0 %v902
    %v1092 = vpop.f32.mrb[0].mxu0
    %v1093 = vadd.f32 0.0, %v1092
    %v1094 = vpop.f32.mrb[0].mxu0
    %1095 = vdwg.mxu0
    %v1096 = vmul.f32 %v1078, %v1078
    %v1097 = vmul.f32 %v1083, %v1083
    %v1098 = vmul.f32 %v1088, %v1088
    %v1099 = vmul.f32 %v1093, %v1093
    %v1100 = vsel %vm471, %v1096, 0.0
    %v1101 = vsel %vm471, %v1097, 0.0
    %v1102 = vadd.f32 %v1100, %v1101
    %v1103 = vsel %vm471, %v1098, 0.0
    %v1104 = vadd.f32 %v1102, %v1103
    %v1105 = vsel %vm998, %v1099, 0.0
    %v1106 = vadd.f32 %v1104, %v1105
    %1107 = vadd.xlane.f32.xlu0 %v1106
    %v1108 = vpop.xlane.xlu0 %1107
    %v1109 = vrot.slane %v1108, 4
    %v1110 = vadd.f32 %v1108, %v1109
    %v1111 = vrot.slane %v1110, 2
    %v1112 = vadd.f32 %v1110, %v1111
    %v1113 = vrot.slane %v1112, 1
    %v1114 = vadd.f32 %v1112, %v1113
    %s1115 = vtos %v1114
    %s1116 = sadd.f32 %s1010, %s1115
    %1117 = vxpose.xlu0.b32.start [1/16] %v731, 128
    %1118 = vxpose.xlu0.b32.cont [2/16] %v732, 128
    %1119 = vxpose.xlu0.b32.cont [3/16] %v733, 128
    %1120 = vxpose.xlu0.b32.cont [4/16] %v734, 128
    %1121 = vxpose.xlu0.b32.cont [5/16] %v851, 128
    %1122 = vxpose.xlu0.b32.cont [6/16] %v852, 128
    %1123 = vxpose.xlu0.b32.cont [7/16] %v853, 128
    %1124 = vxpose.xlu0.b32.cont [8/16] %v854, 128
    %1125 = vxpose.xlu0.b32.cont [9/16] 0.0, 128
    %1126 = vxpose.xlu0.b32.cont [10/16] 0.0, 128
    %1127 = vxpose.xlu0.b32.cont [11/16] 0.0, 128
    %1128 = vxpose.xlu0.b32.cont [12/16] 0.0, 128
    %1129 = vxpose.xlu0.b32.cont [13/16] 0.0, 128
    %1130 = vxpose.xlu0.b32.cont [14/16] 0.0, 128
    %1131 = vxpose.xlu0.b32.cont [15/16] 0.0, 128
    %1132 = vxpose.xlu0.b32.end [16/16] 0.0, 128
    %v1133 = vpop.trf.xlu0
    %v1134 = vpop.trf.xlu0
    %v1135 = vpop.trf.xlu0
    %v1136 = vpop.trf.xlu0
    %v1137 = vpop.trf.xlu0
    %v1138 = vpop.trf.xlu0
    %v1139 = vpop.trf.xlu0
    %v1140 = vpop.trf.xlu0
    %v1141 = vpop.trf.xlu0
    %v1142 = vpop.trf.xlu0
    %v1143 = vpop.trf.xlu0
    %v1144 = vpop.trf.xlu0
    %v1145 = vpop.trf.xlu0
    %v1146 = vpop.trf.xlu0
    %v1147 = vpop.trf.xlu0
    %v1148 = vpop.trf.xlu0
    %v1150 = vsel %vm891, %v1133, 0
    %v1153 = vsel %vm891, %v1134, 0
    %v1156 = vsel %vm891, %v1135, 0
    %v1159 = vsel %vm891, %v1136, 0
    %1161 = vmatprep.subr.mxu0 0.0
    %1162 = vmatpush1.msra.mxu0 %v487
    %1163 = vmatprep.subr.mxu0 0.0
    %1164 = vmatpush1.msra.mxu0 %v488
    %1165 = vmatprep.subr.mxu0 0.0
    %1166 = vmatpush1.msra.mxu0 %v489
    %1167 = vmatprep.subr.mxu0 0.0
    %1168 = vmatpush1.msra.mxu0 %v490
    %1169 = vmatprep.subr.mxu0 0.0
    %1170 = vmatpush1.msra.mxu0 %v611
    %1171 = vmatprep.subr.mxu0 0.0
    %1172 = vmatpush1.msra.mxu0 %v612
    %1173 = vmatprep.subr.mxu0 0.0
    %1174 = vmatpush1.msra.mxu0 %v613
    %1175 = vmatprep.subr.mxu0 0.0
    %1176 = vmatpush1.msra.mxu0 %v614
    %1177 = vmatprep.subr.mxu0 0.0
    %1178 = vmatpush1.msra.mxu0 0.0
    %1179 = vmatprep.subr.mxu0 0.0
    %1180 = vmatpush1.msra.mxu0 0.0
    %1181 = vmatprep.subr.mxu0 0.0
    %1182 = vmatpush1.msra.mxu0 0.0
    %1183 = vmatprep.subr.mxu0 0.0
    %1184 = vmatpush1.msra.mxu0 0.0
    %1185 = vmatprep.subr.mxu0 0.0
    %1186 = vmatpush1.msra.mxu0 0.0
    %1187 = vmatprep.subr.mxu0 0.0
    %1188 = vmatpush1.msra.mxu0 0.0
    %1189 = vmatprep.subr.mxu0 0.0
    %1190 = vmatpush1.msra.mxu0 0.0
    %1191 = vmatprep.subr.mxu0 0.0
    %1192 = vmatpush1.msra.mxu0 0.0
    %1193 = vmatprep.subr.mxu0 0.0
    %1194 = vmatpush1.msra.mxu0 0.0
    %1195 = vmatprep.subr.mxu0 0.0
    %1196 = vmatpush1.msra.mxu0 0.0
    %1197 = vmatprep.subr.mxu0 0.0
    %1198 = vmatpush1.msra.mxu0 0.0
    %1199 = vmatprep.subr.mxu0 0.0
    %1200 = vmatpush1.msra.mxu0 0.0
    %1201 = vmatprep.subr.mxu0 0.0
    %1202 = vmatpush1.msra.mxu0 0.0
    %1203 = vmatprep.subr.mxu0 0.0
    %1204 = vmatpush1.msra.mxu0 0.0
    %1205 = vmatprep.subr.mxu0 0.0
    %1206 = vmatpush1.msra.mxu0 0.0
    %1207 = vmatprep.subr.mxu0 0.0
    %1208 = vmatpush1.msra.mxu0 0.0
    %1209 = vmatprep.subr.mxu0 0.0
    %1210 = vmatpush1.msra.mxu0 0.0
    %1211 = vmatprep.subr.mxu0 0.0
    %1212 = vmatpush1.msra.mxu0 0.0
    %1213 = vmatprep.subr.mxu0 0.0
    %1214 = vmatpush1.msra.mxu0 0.0
    %1215 = vmatprep.subr.mxu0 0.0
    %1216 = vmatpush1.msra.mxu0 0.0
    %1217 = vmatprep.subr.mxu0 0.0
    %1218 = vmatpush1.msra.mxu0 0.0
    %1219 = vmatprep.subr.mxu0 0.0
    %1220 = vmatpush1.msra.mxu0 0.0
    %1221 = vmatprep.subr.mxu0 0.0
    %1222 = vmatpush1.msra.mxu0 0.0
    %1223 = vmatprep.subr.mxu0 0.0
    %1224 = vmatpush1.msra.mxu0 0.0
    %1225 = vmatprep.mubr.f32.mxu0 0.0
    %1226 = vmatmul.mubr.f32.gmra.mrb[0].mxu0 %v1150
    %v1227 = vpop.f32.mrb[0].mxu0
    %v1228 = vadd.f32 0.0, %v1227
    %v1229 = vpop.f32.mrb[0].mxu0
    %1230 = vmatprep.mubr.f32.mxu0 0.0
    %1231 = vmatmul.mubr.f32.gmra.mrb[0].mxu0 %v1153
    %v1232 = vpop.f32.mrb[0].mxu0
    %v1233 = vadd.f32 0.0, %v1232
    %v1234 = vpop.f32.mrb[0].mxu0
    %1235 = vmatprep.mubr.f32.mxu0 0.0
    %1236 = vmatmul.mubr.f32.gmra.mrb[0].mxu0 %v1156
    %v1237 = vpop.f32.mrb[0].mxu0
    %v1238 = vadd.f32 0.0, %v1237
    %v1239 = vpop.f32.mrb[0].mxu0
    %1240 = vmatprep.mubr.f32.mxu0 0.0
    %1241 = vmatmul.mubr.f32.gmra.mrb[0].mxu0 %v1159
    %v1242 = vpop.f32.mrb[0].mxu0
    %v1243 = vadd.f32 0.0, %v1242
    %v1244 = vpop.f32.mrb[0].mxu0
    %1245 = vdwg.mxu0
    %v1246 = vmul.f32 %v1228, %v1228
    %v1247 = vmul.f32 %v1233, %v1233
    %v1248 = vmul.f32 %v1238, %v1238
    %v1249 = vmul.f32 %v1243, %v1243
    %v1250 = vsel %vm471, %v1246, 0.0
    %v1251 = vsel %vm471, %v1247, 0.0
    %v1252 = vadd.f32 %v1250, %v1251
    %v1253 = vsel %vm471, %v1248, 0.0
    %v1254 = vadd.f32 %v1252, %v1253
    %v1255 = vsel %vm998, %v1249, 0.0
    %v1256 = vadd.f32 %v1254, %v1255
    %1257 = vadd.xlane.f32.xlu0 %v1256
    %v1258 = vpop.xlane.xlu0 %1257
    %v1259 = vrot.slane %v1258, 4
    %v1260 = vadd.f32 %v1258, %v1259
    %v1261 = vrot.slane %v1260, 2
    %v1262 = vadd.f32 %v1260, %v1261
    %v1263 = vrot.slane %v1262, 1
    %v1264 = vadd.f32 %v1262, %v1263
    %s1265 = vtos %v1264
    %s1266 = sadd.f32 %s1116, %s1265
    %1267 = vmatprep.subr.mxu0 0.0
    %1268 = vmatpush1.msra.mxu0 %v731
    %1269 = vmatprep.subr.mxu0 0.0
    %1270 = vmatpush1.msra.mxu0 %v732
    %1271 = vmatprep.subr.mxu0 0.0
    %1272 = vmatpush1.msra.mxu0 %v733
    %1273 = vmatprep.subr.mxu0 0.0
    %1274 = vmatpush1.msra.mxu0 %v734
    %1275 = vmatprep.subr.mxu0 0.0
    %1276 = vmatpush1.msra.mxu0 %v855
    %1277 = vmatprep.subr.mxu0 0.0
    %1278 = vmatpush1.msra.mxu0 %v856
    %1279 = vmatprep.subr.mxu0 0.0
    %1280 = vmatpush1.msra.mxu0 %v857
    %1281 = vmatprep.subr.mxu0 0.0
    %1282 = vmatpush1.msra.mxu0 %v858
    %1283 = vmatprep.subr.mxu0 0.0
    %1284 = vmatpush1.msra.mxu0 0.0
    %1285 = vmatprep.subr.mxu0 0.0
    %1286 = vmatpush1.msra.mxu0 0.0
    %1287 = vmatprep.subr.mxu0 0.0
    %1288 = vmatpush1.msra.mxu0 0.0
    %1289 = vmatprep.subr.mxu0 0.0
    %1290 = vmatpush1.msra.mxu0 0.0
    %1291 = vmatprep.subr.mxu0 0.0
    %1292 = vmatpush1.msra.mxu0 0.0
    %1293 = vmatprep.subr.mxu0 0.0
    %1294 = vmatpush1.msra.mxu0 0.0
    %1295 = vmatprep.subr.mxu0 0.0
    %1296 = vmatpush1.msra.mxu0 0.0
    %1297 = vmatprep.subr.mxu0 0.0
    %1298 = vmatpush1.msra.mxu0 0.0
    %1299 = vmatprep.subr.mxu0 0.0
    %1300 = vmatpush1.msra.mxu0 0.0
    %1301 = vmatprep.subr.mxu0 0.0
    %1302 = vmatpush1.msra.mxu0 0.0
    %1303 = vmatprep.subr.mxu0 0.0
    %1304 = vmatpush1.msra.mxu0 0.0
    %1305 = vmatprep.subr.mxu0 0.0
    %1306 = vmatpush1.msra.mxu0 0.0
    %1307 = vmatprep.subr.mxu0 0.0
    %1308 = vmatpush1.msra.mxu0 0.0
    %1309 = vmatprep.subr.mxu0 0.0
    %1310 = vmatpush1.msra.mxu0 0.0
    %1311 = vmatprep.subr.mxu0 0.0
    %1312 = vmatpush1.msra.mxu0 0.0
    %1313 = vmatprep.subr.mxu0 0.0
    %1314 = vmatpush1.msra.mxu0 0.0
    %1315 = vmatprep.subr.mxu0 0.0
    %1316 = vmatpush1.msra.mxu0 0.0
    %1317 = vmatprep.subr.mxu0 0.0
    %1318 = vmatpush1.msra.mxu0 0.0
    %1319 = vmatprep.subr.mxu0 0.0
    %1320 = vmatpush1.msra.mxu0 0.0
    %1321 = vmatprep.subr.mxu0 0.0
    %1322 = vmatpush1.msra.mxu0 0.0
    %1323 = vmatprep.subr.mxu0 0.0
    %1324 = vmatpush1.msra.mxu0 0.0
    %1325 = vmatprep.subr.mxu0 0.0
    %1326 = vmatpush1.msra.mxu0 0.0
    %1327 = vmatprep.subr.mxu0 0.0
    %1328 = vmatpush1.msra.mxu0 0.0
    %1329 = vmatprep.subr.mxu0 0.0
    %1330 = vmatpush1.msra.mxu0 0.0
    %1331 = vmatprep.mubr.f32.mxu0 0.0
    %1332 = vmatmul.mubr.f32.gmra.mrb[0].mxu0 %v1150
    %v1333 = vpop.f32.mrb[0].mxu0
    %v1334 = vadd.f32 0.0, %v1333
    %v1335 = vpop.f32.mrb[0].mxu0
    %1336 = vmatprep.mubr.f32.mxu0 0.0
    %1337 = vmatmul.mubr.f32.gmra.mrb[0].mxu0 %v1153
    %v1338 = vpop.f32.mrb[0].mxu0
    %v1339 = vadd.f32 0.0, %v1338
    %v1340 = vpop.f32.mrb[0].mxu0
    %1341 = vmatprep.mubr.f32.mxu0 0.0
    %1342 = vmatmul.mubr.f32.gmra.mrb[0].mxu0 %v1156
    %v1343 = vpop.f32.mrb[0].mxu0
    %v1344 = vadd.f32 0.0, %v1343
    %v1345 = vpop.f32.mrb[0].mxu0
    %1346 = vmatprep.mubr.f32.mxu0 0.0
    %1347 = vmatmul.mubr.f32.gmra.mrb[0].mxu0 %v1159
    %v1348 = vpop.f32.mrb[0].mxu0
    %v1349 = vadd.f32 0.0, %v1348
    %v1350 = vpop.f32.mrb[0].mxu0
    %1351 = vdwg.mxu0
    %v1352 = vmul.f32 %v1334, %v1334
    %v1353 = vmul.f32 %v1339, %v1339
    %v1354 = vmul.f32 %v1344, %v1344
    %v1355 = vmul.f32 %v1349, %v1349
    %v1356 = vsel %vm471, %v1352, 0.0
    %v1357 = vsel %vm471, %v1353, 0.0
    %v1358 = vadd.f32 %v1356, %v1357
    %v1359 = vsel %vm471, %v1354, 0.0
    %v1360 = vadd.f32 %v1358, %v1359
    %v1361 = vsel %vm998, %v1355, 0.0
    %v1362 = vadd.f32 %v1360, %v1361
    %1363 = vadd.xlane.f32.xlu0 %v1362
    %v1364 = vpop.xlane.xlu0 %1363
    %v1365 = vrot.slane %v1364, 4
    %v1366 = vadd.f32 %v1364, %v1365
    %v1367 = vrot.slane %v1366, 2
    %v1368 = vadd.f32 %v1366, %v1367
    %v1369 = vrot.slane %v1368, 1
    %v1370 = vadd.f32 %v1368, %v1369
    %s1371 = vtos %v1370
    %s1372 = sadd.f32 %s1266, %s1371
    %s1373 = smul.f32 %s1372, 0.00034293553
    %s1374 = smul.f32 %s1373, 2.0
    %s1375 = sadd.f32 %s342, %s1374
    %s1376 = smul.f32 %s1375, 0.33333334
    %s1377 = scalar_lea.smem [#allocation2], 0
    %1378 = sst [smem:[%s1377]] %s1376
    // Predicated region
    $region18: #{region_loss_3d_multi_three.1} parent=1 // pred_check
      _
    $region19: #{region_loss_3d_multi_three.1} parent=1 // pred_check_branch
      %1380 = sbr.rel (0) target = $region21
    $region20: #{region_loss_3d_multi_three.1} parent=1 // pred_region
      %s1382 = ssub.s32 16, 16
      %1383 = vsyncadd [#allocation3], %s1382
      %1386 = dma.smem_to_hbm [#allocation2], 16, %s4, [#allocation3]
    $region21: #{region_loss_3d_multi_three.1} parent=1 // pred_fallthru
      _
    // Predicated region
    $region22: #{region_loss_3d_multi_three.1} parent=1 // pred_check
      _
    $region23: #{region_loss_3d_multi_three.1} parent=1 // pred_check_branch
      %1388 = sbr.rel (0) target = $region25
    $region24: #{region_loss_3d_multi_three.1} parent=1 // pred_region
      %1389 = dma.done [#allocation3], 16
    $region25: #{region_loss_3d_multi_three.1} parent=1 // pred_fallthru
      _
    %1390 = sfence
    %1391 = vsyncpa [#allocation3], 1

</llo_original>
